<compile_context>
chip_gen: v6e
topology: v6e:2x2x1
jax: 0.10.0
libtpu: 0.0.40
codegen_flags: <defaults>
</compile_context>

<pallas_src>
import jax
import jax.numpy as jnp
from jax.experimental import pallas as pl
from jax.experimental.pallas import tpu as pltpu

LN_EPS = 1e-5  # nn.LayerNorm default


def _critic_kernel(
    x_ref,
    w1_ref, b1_ref,
    w2_ref, b2_ref,
    w3_ref, b3_ref,
    w4_ref, b4_ref,
    o_ref,
):
  """One TB-row batch tile of the full MLP.

  w1..w3: bf16 [in, out] with the preceding LayerNorm affine folded in.
  b1..b3: f32 [1, out].
  w4:     bf16 [8, H2]  (row 0 = gamma3 * head weight, rows 1..7 zero pad).
  b4:     f32 [1, 1].
  x_ref:  bf16 [TB, S];  o_ref: f32 [1, TB] lane-dense row.
  """

  def block(h, w_ref, b_ref):
    # MXU: bf16 operands, f32 accumulation.  VPU/EUP: bias, ReLU, LN in f32.
    z = jnp.dot(h, w_ref[...], preferred_element_type=jnp.float32) + b_ref[...]
    z = jnp.maximum(z, 0.0)
    # Single-reduction-pass LayerNorm statistics: var = E[z^2] - mu^2.
    mu = jnp.mean(z, axis=-1, keepdims=True)
    var = jnp.maximum(jnp.mean(z * z, axis=-1, keepdims=True) - mu * mu, 0.0)
    # Emit the normalized activation directly in bf16 (it is the next MXU
    # operand); LN affine (gamma, beta) is folded into the next layer.
    return ((z - mu) * jax.lax.rsqrt(var + LN_EPS)).astype(jnp.bfloat16)

  # TODO(synk): Dropout(0.1) train-mode masking would need pltpu.prng_seed /
  # pltpu.prng_random_bits; eval-mode (identity) semantics are reproduced here.
  h = block(x_ref[...], w1_ref, b1_ref)   # Linear -> ReLU -> LN (affine folded)
  h = block(h, w2_ref, b2_ref)            # Linear -> ReLU -> LN (affine folded)
  h = block(h, w3_ref, b3_ref)            # Linear -> ReLU -> LN (affine folded)

  # Value head as a trans_b matmul: [8, H2] . [TB, H2]^T -> [8, TB]; only
  # row 0 carries real weights, so the useful result is the [1, TB] row and
  # the store is lane-dense (unmasked vst) instead of a masked [TB, 1] column.
  head = jax.lax.dot_general(
      w4_ref[...], h,
      dimension_numbers=(((1,), (1,)), ((), ())),
      preferred_element_type=jnp.float32)
  o_ref[...] = head[0:1, :] + b4_ref[...]


def _round_up(v, m):
  return ((v + m - 1) // m) * m


def critic_forward(x, kernel_params, *, tb=2048):
  """Batch-tiled pallas_call. `kernel_params` come from fold_params()."""
  w1, b1, w2, b2, w3, b3, w4, b4 = kernel_params
  b, s = x.shape
  hdim = w1.shape[1]
  h2 = w3.shape[1]

  param_bytes = sum(int(p.size) * p.dtype.itemsize for p in kernel_params)

  # --- Tile-size policy ------------------------------------------------------
  # Clamp the tile to the 128-padded batch (tiny minibatches don't pay for
  # hundreds of dead rows); keep tb a multiple of 128 for lane-dense output.
  b_pad = _round_up(b, 128)
  tb = max(128, min(_round_up(tb, 128), b_pad))
  # Keep >= 2 grid steps when possible so v7x's second TensorCore has work.
  if tb == b_pad and b_pad >= 256:
    tb = _round_up(b_pad // 2, 128)

  # VMEM re-budget (v7x has only 64 MiB physical; even constant-index weights
  # are double-buffered): shrink tb until the live working set fits.
  def live_bytes(t):
    return (2 * t * s * 2                   # double-buffered bf16 x tiles
            + 8 * t * max(hdim, h2) * 4     # live f32 [t, H] temporaries
            + 2 * t * 4                     # double-buffered output row
            + 2 * param_bytes)              # weights/biases (2 buffers each)
  while tb > 128 and live_bytes(tb) > (40 << 20):
    tb = max(128, _round_up(tb // 2, 128))

  b_pad = _round_up(b_pad, tb)
  grid = (b_pad // tb,)

  # Pad ragged batches (padded rows are harmless: LN is per-row, var+eps > 0,
  # and they are sliced off on return); bf16 halves the batch HBM stream.
  if b_pad != b:
    x = jnp.pad(x, ((0, b_pad - b), (0, 0)))
  x = x.astype(jnp.bfloat16)

  const = lambda shape: pl.BlockSpec(shape, lambda i: (0, 0))  # VMEM-resident

  flops = 2 * b_pad * (s * hdim + hdim * hdim + hdim * h2 + h2)
  bytes_accessed = int(x.size) * x.dtype.itemsize + param_bytes + b_pad * 4

  # Raise the scoped-VMEM limit explicitly (v5e's default is only 16 MiB) but
  # stay well under v7x's 64 MiB physical VMEM.
  vmem_limit = int(min(max(32 << 20, live_bytes(tb) + (8 << 20)), 60 << 20))

  out = pl.pallas_call(
      _critic_kernel,
      out_shape=jax.ShapeDtypeStruct((1, b_pad), jnp.float32),
      grid=grid,
      in_specs=[
          pl.BlockSpec((tb, s), lambda i: (i, 0)),     # x: tiled over batch
          const(w1.shape), const(b1.shape),
          const(w2.shape), const(b2.shape),
          const(w3.shape), const(b3.shape),
          const(w4.shape), const(b4.shape),
      ],
      out_specs=pl.BlockSpec((1, tb), lambda i: (0, i)),  # lane-dense row
      compiler_params=pltpu.CompilerParams(
          # Batch tiles are independent.  On v7x, pltpu.CORE_PARALLEL would
          # additionally shard the grid across both TensorCores; "parallel"
          # is kept so the identical kernel also compiles on 1-TC v5e/v6e.
          dimension_semantics=("parallel",),
          vmem_limit_bytes=vmem_limit),
      cost_estimate=pl.CostEstimate(
          flops=flops,
          transcendentals=3 * b_pad,        # one rsqrt per LayerNorm per row
          bytes_accessed=bytes_accessed),
  )(x, *kernel_params)
  return out[0, :b].reshape(b, 1)


# ----------------------------------------------------------------------------
# Parameter construction / preparation
# ----------------------------------------------------------------------------

def _orthogonal(key, out_dim, in_dim, gain=0.01):
  """Deterministic orthogonal init (same spirit as nn.init.orthogonal_)."""
  rows, cols = out_dim, in_dim
  a = jax.random.normal(key, (max(rows, cols), min(rows, cols)), jnp.float32)
  q, r = jnp.linalg.qr(a)
  q = q * jnp.sign(jnp.diagonal(r))
  if rows < cols:
    q = q.T
  return gain * q[:rows, :cols]  # [out, in], PyTorch layout


def make_params(key, state_dim, hidden_dim):
  """Raw module params in PyTorch layout: W [out,in], b [out], LN gamma/beta [F].

  NOTE: the PyTorch module initializes biases to 0 and LayerNorm to (1, 0);
  non-trivial values are used here so the LN-affine folding path is actually
  exercised by the correctness check.
  """
  h, h2 = hidden_dim, hidden_dim // 2
  ks = jax.random.split(key, 16)
  nrm = lambda k, shape, scale: scale * jax.random.normal(k, shape, jnp.float32)
  return dict(
      w1=_orthogonal(ks[0], h, state_dim), b1=nrm(ks[4], (h,), 0.5),
      g1=1.0 + nrm(ks[8], (h,), 0.2),      be1=nrm(ks[11], (h,), 0.2),
      w2=_orthogonal(ks[1], h, h),         b2=nrm(ks[5], (h,), 0.5),
      g2=1.0 + nrm(ks[9], (h,), 0.2),      be2=nrm(ks[12], (h,), 0.2),
      w3=_orthogonal(ks[2], h2, h),        b3=nrm(ks[6], (h2,), 0.5),
      g3=1.0 + nrm(ks[10], (h2,), 0.2),    be3=nrm(ks[13], (h2,), 0.2),
      w4=_orthogonal(ks[3], 1, h2),        b4=nrm(ks[7], (1,), 0.5),
  )


def fold_params(p):
  """Kernel layout: transpose weights to [in,out], fold LN affine into the
  following layer (in f32, cast last), cast MXU operands to bf16."""
  w1 = p["w1"].T.astype(jnp.bfloat16)                              # [S, H]
  b1 = p["b1"][None, :].astype(jnp.float32)                        # [1, H]
  w2 = (p["g1"][:, None] * p["w2"].T).astype(jnp.bfloat16)         # [H, H]
  b2 = (p["b2"] + p["be1"] @ p["w2"].T)[None, :].astype(jnp.float32)
  w3 = (p["g2"][:, None] * p["w3"].T).astype(jnp.bfloat16)         # [H, H2]
  b3 = (p["b3"] + p["be2"] @ p["w3"].T)[None, :].astype(jnp.float32)
  w4_row = (p["g3"] * p["w4"][0])[None, :]                         # [1, H2]
  w4 = jnp.pad(w4_row, ((0, 7), (0, 0))).astype(jnp.bfloat16)      # [8, H2]
  b4 = (p["b4"] + p["be3"] @ p["w4"][0]).reshape(1, 1).astype(jnp.float32)
  return (w1, b1, w2, b2, w3, b3, w4, b4)


def critic_reference(x, p):
  """Pure-JAX f32 reference of the original module (eval-mode dropout)."""
  def ln(h, g, be):
    mu = jnp.mean(h, axis=-1, keepdims=True)
    var = jnp.mean((h - mu) ** 2, axis=-1, keepdims=True)
    return (h - mu) / jnp.sqrt(var + LN_EPS) * g + be

  h = jnp.maximum(x @ p["w1"].T + p["b1"], 0.0)
  h = ln(h, p["g1"], p["be1"])
  h = jnp.maximum(h @ p["w2"].T + p["b2"], 0.0)
  h = ln(h, p["g2"], p["be2"])
  h = jnp.maximum(h @ p["w3"].T + p["b3"], 0.0)
  h = ln(h, p["g3"], p["be3"])
  return h @ p["w4"].T + p["b4"]


if __name__ == "__main__":
  key = jax.random.PRNGKey(0)
  k_x, k_p = jax.random.split(key)

  batch = 8
  state_dim = 32
  hidden_dim = 256   # module default; keeps H=256 / H2=128 MXU/lane aligned

  x = jax.random.normal(k_x, (batch, state_dim), jnp.float32)
  raw_params = make_params(k_p, state_dim, hidden_dim)
  kernel_params = fold_params(raw_params)

  out = critic_forward(x, kernel_params)   # tb auto-clamped to 128 for batch=8
  out = jax.block_until_ready(out)

  ref = critic_reference(x, raw_params)
  assert out.shape == (batch, 1), out.shape
  # bf16 MXU operands and bf16 inter-layer activations vs an f32 reference.
  assert jnp.allclose(out, ref, atol=2e-2, rtol=2e-2), (out, ref)

  print("KERNEL_OK")
</pallas_src>

<mosaic_0001>
module attributes {stable_mosaic.version = 11 : i64} {
  func.func @_critic_kernel(%arg0: i32, %arg1: memref<128x32xbf16, #tpu.memory_space<vmem>>, %arg2: memref<32x256xbf16, #tpu.memory_space<vmem>>, %arg3: memref<1x256xf32, #tpu.memory_space<vmem>>, %arg4: memref<256x256xbf16, #tpu.memory_space<vmem>>, %arg5: memref<1x256xf32, #tpu.memory_space<vmem>>, %arg6: memref<256x128xbf16, #tpu.memory_space<vmem>>, %arg7: memref<1x128xf32, #tpu.memory_space<vmem>>, %arg8: memref<8x128xbf16, #tpu.memory_space<vmem>>, %arg9: memref<1x1xf32, #tpu.memory_space<vmem>>, %arg10: memref<1x128xf32, #tpu.memory_space<vmem>>) attributes {dimension_semantics = [#tpu.dimension_semantics<parallel>], iteration_bounds = array<i64: 1>, scalar_prefetch = 0 : i64, scratch_operands = 0 : i64, tpu.core_type = #tpu.core_type<tc>, window_params = [{transform_indices = @transform_0, window_bounds = array<i64: 128, 32>}, {pipeline_mode = #tpu.pipeline_mode<synchronous>, transform_indices = @transform_1, window_bounds = array<i64: 32, 256>}, {pipeline_mode = #tpu.pipeline_mode<synchronous>, transform_indices = @transform_2, window_bounds = array<i64: 1, 256>}, {pipeline_mode = #tpu.pipeline_mode<synchronous>, transform_indices = @transform_3, window_bounds = array<i64: 256, 256>}, {pipeline_mode = #tpu.pipeline_mode<synchronous>, transform_indices = @transform_4, window_bounds = array<i64: 1, 256>}, {pipeline_mode = #tpu.pipeline_mode<synchronous>, transform_indices = @transform_5, window_bounds = array<i64: 256, 128>}, {pipeline_mode = #tpu.pipeline_mode<synchronous>, transform_indices = @transform_6, window_bounds = array<i64: 1, 128>}, {pipeline_mode = #tpu.pipeline_mode<synchronous>, transform_indices = @transform_7, window_bounds = array<i64: 8, 128>}, {pipeline_mode = #tpu.pipeline_mode<synchronous>, transform_indices = @transform_8, window_bounds = array<i64: 1, 1>}, {transform_indices = @transform_9, window_bounds = array<i64: 1, 128>}]} {
    %c0 = arith.constant 0 : index
    %c0_0 = arith.constant 0 : index
    %0 = vector.load %arg1[%c0, %c0_0] : memref<128x32xbf16, #tpu.memory_space<vmem>>, vector<128x32xbf16>
    %c0_1 = arith.constant 0 : index
    %c0_2 = arith.constant 0 : index
    %1 = vector.load %arg2[%c0_1, %c0_2] : memref<32x256xbf16, #tpu.memory_space<vmem>>, vector<32x256xbf16>
    %cst = arith.constant dense<0.000000e+00> : vector<128x256xf32>
    %2 = tpu.matmul %0, %1, %cst {dimension_numbers = #tpu.dot_dimension_numbers<[1], [0], [0], [1], [0, 0, 1, 1], [], []>} : vector<128x32xbf16>, vector<32x256xbf16>, vector<128x256xf32> -> vector<128x256xf32>
    %c0_3 = arith.constant 0 : index
    %c0_4 = arith.constant 0 : index
    %3 = vector.load %arg3[%c0_3, %c0_4] : memref<1x256xf32, #tpu.memory_space<vmem>>, vector<1x256xf32>
    %4 = vector.broadcast %3 : vector<1x256xf32> to vector<128x256xf32>
    %5 = arith.addf %2, %4 : vector<128x256xf32>
    %cst_5 = arith.constant 0.000000e+00 : f32
    %6 = vector.broadcast %cst_5 : f32 to vector<128x256xf32>
    %7 = arith.maximumf %5, %6 : vector<128x256xf32>
    %cst_6 = arith.constant dense<0.000000e+00> : vector<128xf32>
    %8 = vector.multi_reduction <add>, %7, %cst_6 [1] : vector<128x256xf32> to vector<128xf32>
    %9 = vector.shape_cast %8 : vector<128xf32> to vector<128x1xf32>
    %cst_7 = arith.constant 2.560000e+02 : f32
    %10 = vector.broadcast %cst_7 : f32 to vector<128x1xf32>
    %11 = arith.divf %9, %10 : vector<128x1xf32>
    %12 = arith.mulf %7, %7 : vector<128x256xf32>
    %cst_8 = arith.constant dense<0.000000e+00> : vector<128xf32>
    %13 = vector.multi_reduction <add>, %12, %cst_8 [1] : vector<128x256xf32> to vector<128xf32>
    %14 = vector.shape_cast %13 : vector<128xf32> to vector<128x1xf32>
    %cst_9 = arith.constant 2.560000e+02 : f32
    %15 = vector.broadcast %cst_9 : f32 to vector<128x1xf32>
    %16 = arith.divf %14, %15 : vector<128x1xf32>
    %17 = arith.mulf %11, %11 : vector<128x1xf32>
    %18 = arith.subf %16, %17 : vector<128x1xf32>
    %cst_10 = arith.constant 0.000000e+00 : f32
    %19 = vector.broadcast %cst_10 : f32 to vector<128x1xf32>
    %20 = arith.maximumf %18, %19 : vector<128x1xf32>
    %21 = vector.broadcast %11 : vector<128x1xf32> to vector<128x256xf32>
    %22 = arith.subf %7, %21 : vector<128x256xf32>
    %cst_11 = arith.constant 9.99999974E-6 : f32
    %23 = vector.broadcast %cst_11 : f32 to vector<128x1xf32>
    %24 = arith.addf %20, %23 : vector<128x1xf32>
    %25 = math.rsqrt %24 : vector<128x1xf32>
    %26 = vector.broadcast %25 : vector<128x1xf32> to vector<128x256xf32>
    %27 = arith.mulf %22, %26 : vector<128x256xf32>
    %28 = arith.truncf %27 : vector<128x256xf32> to vector<128x256xbf16>
    %c0_12 = arith.constant 0 : index
    %c0_13 = arith.constant 0 : index
    %29 = vector.load %arg4[%c0_12, %c0_13] : memref<256x256xbf16, #tpu.memory_space<vmem>>, vector<256x256xbf16>
    %cst_14 = arith.constant dense<0.000000e+00> : vector<128x256xf32>
    %30 = tpu.matmul %28, %29, %cst_14 {dimension_numbers = #tpu.dot_dimension_numbers<[1], [0], [0], [1], [0, 0, 1, 1], [], []>} : vector<128x256xbf16>, vector<256x256xbf16>, vector<128x256xf32> -> vector<128x256xf32>
    %c0_15 = arith.constant 0 : index
    %c0_16 = arith.constant 0 : index
    %31 = vector.load %arg5[%c0_15, %c0_16] : memref<1x256xf32, #tpu.memory_space<vmem>>, vector<1x256xf32>
    %32 = vector.broadcast %31 : vector<1x256xf32> to vector<128x256xf32>
    %33 = arith.addf %30, %32 : vector<128x256xf32>
    %cst_17 = arith.constant 0.000000e+00 : f32
    %34 = vector.broadcast %cst_17 : f32 to vector<128x256xf32>
    %35 = arith.maximumf %33, %34 : vector<128x256xf32>
    %cst_18 = arith.constant dense<0.000000e+00> : vector<128xf32>
    %36 = vector.multi_reduction <add>, %35, %cst_18 [1] : vector<128x256xf32> to vector<128xf32>
    %37 = vector.shape_cast %36 : vector<128xf32> to vector<128x1xf32>
    %cst_19 = arith.constant 2.560000e+02 : f32
    %38 = vector.broadcast %cst_19 : f32 to vector<128x1xf32>
    %39 = arith.divf %37, %38 : vector<128x1xf32>
    %40 = arith.mulf %35, %35 : vector<128x256xf32>
    %cst_20 = arith.constant dense<0.000000e+00> : vector<128xf32>
    %41 = vector.multi_reduction <add>, %40, %cst_20 [1] : vector<128x256xf32> to vector<128xf32>
    %42 = vector.shape_cast %41 : vector<128xf32> to vector<128x1xf32>
    %cst_21 = arith.constant 2.560000e+02 : f32
    %43 = vector.broadcast %cst_21 : f32 to vector<128x1xf32>
    %44 = arith.divf %42, %43 : vector<128x1xf32>
    %45 = arith.mulf %39, %39 : vector<128x1xf32>
    %46 = arith.subf %44, %45 : vector<128x1xf32>
    %cst_22 = arith.constant 0.000000e+00 : f32
    %47 = vector.broadcast %cst_22 : f32 to vector<128x1xf32>
    %48 = arith.maximumf %46, %47 : vector<128x1xf32>
    %49 = vector.broadcast %39 : vector<128x1xf32> to vector<128x256xf32>
    %50 = arith.subf %35, %49 : vector<128x256xf32>
    %cst_23 = arith.constant 9.99999974E-6 : f32
    %51 = vector.broadcast %cst_23 : f32 to vector<128x1xf32>
    %52 = arith.addf %48, %51 : vector<128x1xf32>
    %53 = math.rsqrt %52 : vector<128x1xf32>
    %54 = vector.broadcast %53 : vector<128x1xf32> to vector<128x256xf32>
    %55 = arith.mulf %50, %54 : vector<128x256xf32>
    %56 = arith.truncf %55 : vector<128x256xf32> to vector<128x256xbf16>
    %c0_24 = arith.constant 0 : index
    %c0_25 = arith.constant 0 : index
    %57 = vector.load %arg6[%c0_24, %c0_25] : memref<256x128xbf16, #tpu.memory_space<vmem>>, vector<256x128xbf16>
    %cst_26 = arith.constant dense<0.000000e+00> : vector<128x128xf32>
    %58 = tpu.matmul %56, %57, %cst_26 {dimension_numbers = #tpu.dot_dimension_numbers<[1], [0], [0], [1], [0, 0, 1, 1], [], []>} : vector<128x256xbf16>, vector<256x128xbf16>, vector<128x128xf32> -> vector<128x128xf32>
    %c0_27 = arith.constant 0 : index
    %c0_28 = arith.constant 0 : index
    %59 = vector.load %arg7[%c0_27, %c0_28] : memref<1x128xf32, #tpu.memory_space<vmem>>, vector<1x128xf32>
    %60 = vector.broadcast %59 : vector<1x128xf32> to vector<128x128xf32>
    %61 = arith.addf %58, %60 : vector<128x128xf32>
    %cst_29 = arith.constant 0.000000e+00 : f32
    %62 = vector.broadcast %cst_29 : f32 to vector<128x128xf32>
    %63 = arith.maximumf %61, %62 : vector<128x128xf32>
    %cst_30 = arith.constant dense<0.000000e+00> : vector<128xf32>
    %64 = vector.multi_reduction <add>, %63, %cst_30 [1] : vector<128x128xf32> to vector<128xf32>
    %65 = vector.shape_cast %64 : vector<128xf32> to vector<128x1xf32>
    %cst_31 = arith.constant 1.280000e+02 : f32
    %66 = vector.broadcast %cst_31 : f32 to vector<128x1xf32>
    %67 = arith.divf %65, %66 : vector<128x1xf32>
    %68 = arith.mulf %63, %63 : vector<128x128xf32>
    %cst_32 = arith.constant dense<0.000000e+00> : vector<128xf32>
    %69 = vector.multi_reduction <add>, %68, %cst_32 [1] : vector<128x128xf32> to vector<128xf32>
    %70 = vector.shape_cast %69 : vector<128xf32> to vector<128x1xf32>
    %cst_33 = arith.constant 1.280000e+02 : f32
    %71 = vector.broadcast %cst_33 : f32 to vector<128x1xf32>
    %72 = arith.divf %70, %71 : vector<128x1xf32>
    %73 = arith.mulf %67, %67 : vector<128x1xf32>
    %74 = arith.subf %72, %73 : vector<128x1xf32>
    %cst_34 = arith.constant 0.000000e+00 : f32
    %75 = vector.broadcast %cst_34 : f32 to vector<128x1xf32>
    %76 = arith.maximumf %74, %75 : vector<128x1xf32>
    %77 = vector.broadcast %67 : vector<128x1xf32> to vector<128x128xf32>
    %78 = arith.subf %63, %77 : vector<128x128xf32>
    %cst_35 = arith.constant 9.99999974E-6 : f32
    %79 = vector.broadcast %cst_35 : f32 to vector<128x1xf32>
    %80 = arith.addf %76, %79 : vector<128x1xf32>
    %81 = math.rsqrt %80 : vector<128x1xf32>
    %82 = vector.broadcast %81 : vector<128x1xf32> to vector<128x128xf32>
    %83 = arith.mulf %78, %82 : vector<128x128xf32>
    %84 = arith.truncf %83 : vector<128x128xf32> to vector<128x128xbf16>
    %c0_36 = arith.constant 0 : index
    %c0_37 = arith.constant 0 : index
    %85 = vector.load %arg8[%c0_36, %c0_37] : memref<8x128xbf16, #tpu.memory_space<vmem>>, vector<8x128xbf16>
    %cst_38 = arith.constant dense<0.000000e+00> : vector<8x128xf32>
    %86 = tpu.matmul %85, %84, %cst_38 {dimension_numbers = #tpu.dot_dimension_numbers<[1], [1], [0], [0], [0, 0, 1, 0], [], []>} : vector<8x128xbf16>, vector<128x128xbf16>, vector<8x128xf32> -> vector<8x128xf32>
    %87 = vector.extract_strided_slice %86 {offsets = [0, 0], sizes = [1, 128], strides = [1, 1]} : vector<8x128xf32> to vector<1x128xf32>
    %c0_39 = arith.constant 0 : index
    %c0_40 = arith.constant 0 : index
    %88 = vector.load %arg9[%c0_39, %c0_40] : memref<1x1xf32, #tpu.memory_space<vmem>>, vector<1x1xf32>
    %89 = vector.broadcast %88 : vector<1x1xf32> to vector<1x128xf32>
    %90 = arith.addf %87, %89 : vector<1x128xf32>
    %c0_41 = arith.constant 0 : index
    %c0_42 = arith.constant 0 : index
    %91 = vector.load %arg10[%c0_41, %c0_42] : memref<1x128xf32, #tpu.memory_space<vmem>>, vector<1x128xf32>
    tpu.vector_store %arg10[%c0_41, %c0_42], %90 {strides = array<i32>} : memref<1x128xf32, #tpu.memory_space<vmem>>, vector<1x128xf32>,
    return
  }
  func.func @transform_0(%arg0: i32) -> (i32, i32) {
    %c0_i32 = arith.constant 0 : i32
    %c0_i32_0 = arith.constant 0 : i32
    return %arg0, %c0_i32 : i32, i32
  }
  func.func @transform_1(%arg0: i32) -> (i32, i32) {
    %c0_i32 = arith.constant 0 : i32
    %c0_i32_0 = arith.constant 0 : i32
    %c0_i32_1 = arith.constant 0 : i32
    return %c0_i32, %c0_i32_0 : i32, i32
  }
  func.func @transform_2(%arg0: i32) -> (i32, i32) {
    %c0_i32 = arith.constant 0 : i32
    %c0_i32_0 = arith.constant 0 : i32
    %c0_i32_1 = arith.constant 0 : i32
    return %c0_i32, %c0_i32_0 : i32, i32
  }
  func.func @transform_3(%arg0: i32) -> (i32, i32) {
    %c0_i32 = arith.constant 0 : i32
    %c0_i32_0 = arith.constant 0 : i32
    %c0_i32_1 = arith.constant 0 : i32
    return %c0_i32, %c0_i32_0 : i32, i32
  }
  func.func @transform_4(%arg0: i32) -> (i32, i32) {
    %c0_i32 = arith.constant 0 : i32
    %c0_i32_0 = arith.constant 0 : i32
    %c0_i32_1 = arith.constant 0 : i32
    return %c0_i32, %c0_i32_0 : i32, i32
  }
  func.func @transform_5(%arg0: i32) -> (i32, i32) {
    %c0_i32 = arith.constant 0 : i32
    %c0_i32_0 = arith.constant 0 : i32
    %c0_i32_1 = arith.constant 0 : i32
    return %c0_i32, %c0_i32_0 : i32, i32
  }
  func.func @transform_6(%arg0: i32) -> (i32, i32) {
    %c0_i32 = arith.constant 0 : i32
    %c0_i32_0 = arith.constant 0 : i32
    %c0_i32_1 = arith.constant 0 : i32
    return %c0_i32, %c0_i32_0 : i32, i32
  }
  func.func @transform_7(%arg0: i32) -> (i32, i32) {
    %c0_i32 = arith.constant 0 : i32
    %c0_i32_0 = arith.constant 0 : i32
    %c0_i32_1 = arith.constant 0 : i32
    return %c0_i32, %c0_i32_0 : i32, i32
  }
  func.func @transform_8(%arg0: i32) -> (i32, i32) {
    %c0_i32 = arith.constant 0 : i32
    %c0_i32_0 = arith.constant 0 : i32
    %c0_i32_1 = arith.constant 0 : i32
    return %c0_i32, %c0_i32_0 : i32, i32
  }
  func.func @transform_9(%arg0: i32) -> (i32, i32) {
    %c0_i32 = arith.constant 0 : i32
    %c0_i32_0 = arith.constant 0 : i32
    return %c0_i32, %arg0 : i32, i32
  }
}

</mosaic_0001>

<llo_original>
// kernel: tpu_custom_call.1
$region0: #{tpu_custom_call.1}
  #allocation0 [shape = 'u32[]', space=smem, size = 0x4, offset = 0x4, fixed_abs, tag = 'smem constant byte address 0x4 - core index']
  #allocation1 [shape = 'u32[144,128]{1,0:T(1,128)}', space=vmem, size = 0x12000, scoped, tag = 'internal scratch']
  #allocation2 [shape = 'f32[1,1]{1,0:T(1,128)S(1)}', space=vmem, size = 0x200, scoped, tag = 'scoped memory for tpu_custom_call.1']
  %s0 = inlined_call_operand.vmem [shape: bf16[128,32], index: 0, kind: input, shape index: {}]
  %s1 = inlined_call_operand.vmem [shape: bf16[32,256], index: 1, kind: input, shape index: {}]
  %s2 = inlined_call_operand.vmem [shape: f32[1,256], index: 2, kind: input, shape index: {}]
  %s3 = inlined_call_operand.hbm [shape: bf16[256,256], index: 3, kind: input, shape index: {}]
  %s4 = inlined_call_operand.vmem [shape: f32[1,256], index: 4, kind: input, shape index: {}]
  %s5 = inlined_call_operand.hbm [shape: bf16[256,128], index: 5, kind: input, shape index: {}]
  %s6 = inlined_call_operand.vmem [shape: f32[1,128], index: 6, kind: input, shape index: {}]
  %s7 = inlined_call_operand.vmem [shape: bf16[8,128], index: 7, kind: input, shape index: {}]
  %s8 = inlined_call_operand.<no memory space> [shape: f32[1,1], index: 8, kind: input, shape index: {}]
  %s9 = inlined_call_operand.hbm [shape: f32[1,128], index: 9, kind: output, shape index: {}]
  %s10 = sld [smem:[#allocation0]]
  $region54: #{tpu_custom_call.1} parent=0
    _
  %s12 = ssub.s32 1, %s10
  %s13 = scalar_select 0, %s12, %s10
  %v14 = vstv %s8
  %15 = vst [vmem:[#allocation2] sm:$0x1] %v14
  $region1: #{tpu_custom_call.1} parent=0
    #allocation3 [shape = 'u8[131072]{0}', space=vmem, size = 0x20000, scoped, tag = 'input window, operand 3, single buffered']
    #allocation4 [shape = 's32[1]{0}', space=sflag, size = 0x4, scoped, tag = 'scoped memory for tpu_custom_call.1']
    #allocation5 [shape = 's32[1]{0}', space=sflag, size = 0x4, scoped, tag = 'scoped memory for tpu_custom_call.1']
    #allocation6 [shape = 'u8[65536]{0}', space=vmem, size = 0x10000, scoped, tag = 'input window, operand 5, single buffered']
    #allocation7 [shape = 's32[1]{0}', space=sflag, size = 0x4, scoped, tag = 'scoped memory for tpu_custom_call.1']
    #allocation8 [shape = 'u8[512]{0}', space=vmem, size = 0x400, scoped, tag = 'output window, operand 0, single buffered']
    %16 = vsyncpa [#allocation4], 0
    %17 = vsyncpa [#allocation7], 0
    %18 = vsyncpa [#allocation5], 0
    // Predicated region
    $region2: #{tpu_custom_call.1} parent=1 // pred_check
      _
    $region3: #{tpu_custom_call.1} parent=1 // pred_check_branch
      %20 = sbr.rel (0) target = $region5
    $region4: #{tpu_custom_call.1} parent=1 // pred_region
      _
    $region5: #{tpu_custom_call.1} parent=1 // pred_fallthru
      _
    // Predicated region
    $region6: #{tpu_custom_call.1} parent=1 // pred_check
      _
    $region7: #{tpu_custom_call.1} parent=1 // pred_check_branch
      %22 = sbr.rel (0) target = $region9
    $region8: #{tpu_custom_call.1} parent=1 // pred_region
      _
    $region9: #{tpu_custom_call.1} parent=1 // pred_fallthru
      _
    // Predicated region
    $region10: #{tpu_custom_call.1} parent=1 // pred_check
      _
    $region11: #{tpu_custom_call.1} parent=1 // pred_check_branch
      %24 = sbr.rel (0) target = $region13
    $region12: #{tpu_custom_call.1} parent=1 // pred_region
      _
    $region13: #{tpu_custom_call.1} parent=1 // pred_fallthru
      _
    // Predicated region
    $region14: #{tpu_custom_call.1} parent=1 // pred_check
      _
    $region15: #{tpu_custom_call.1} parent=1 // pred_check_branch
      %26 = sbr.rel (0) target = $region17
    $region16: #{tpu_custom_call.1} parent=1 // pred_region
      %s28 = ssub.s32 4096, 4096
      %29 = vsyncadd [#allocation4], %s28
      %s30 = sshll.u32 [#allocation3], 4
      %s31 = int_to_ptr.vmem [resolvable:$true] %s30
      %36 = dma.hbm_to_vmem [thread:$0]  %s3, 4096, %s31, [#allocation4], 128, 128, 8
    $region17: #{tpu_custom_call.1} parent=1 // pred_fallthru
      _
    // Predicated region
    $region18: #{tpu_custom_call.1} parent=1 // pred_check
      _
    $region19: #{tpu_custom_call.1} parent=1 // pred_check_branch
      %38 = sbr.rel (0) target = $region21
    $region20: #{tpu_custom_call.1} parent=1 // pred_region
      _
    $region21: #{tpu_custom_call.1} parent=1 // pred_fallthru
      _
    // Predicated region
    $region22: #{tpu_custom_call.1} parent=1 // pred_check
      _
    $region23: #{tpu_custom_call.1} parent=1 // pred_check_branch
      %40 = sbr.rel (0) target = $region25
    $region24: #{tpu_custom_call.1} parent=1 // pred_region
      %s42 = ssub.s32 2048, 2048
      %43 = vsyncadd [#allocation7], %s42
      %s44 = sshll.u32 [#allocation6], 4
      %s45 = int_to_ptr.vmem [resolvable:$true] %s44
      %50 = dma.hbm_to_vmem [thread:$0]  %s5, 2048, %s45, [#allocation7], 64, 64, 4
    $region25: #{tpu_custom_call.1} parent=1 // pred_fallthru
      _
    // Predicated region
    $region26: #{tpu_custom_call.1} parent=1 // pred_check
      _
    $region27: #{tpu_custom_call.1} parent=1 // pred_check_branch
      %52 = sbr.rel (0) target = $region29
    $region28: #{tpu_custom_call.1} parent=1 // pred_region
      _
    $region29: #{tpu_custom_call.1} parent=1 // pred_fallthru
      _
    // Predicated region
    $region30: #{tpu_custom_call.1} parent=1 // pred_check
      _
    $region31: #{tpu_custom_call.1} parent=1 // pred_check_branch
      %54 = sbr.rel (0) target = $region33
    $region32: #{tpu_custom_call.1} parent=1 // pred_region
      _
    $region33: #{tpu_custom_call.1} parent=1 // pred_fallthru
      _
    // Predicated region
    $region34: #{tpu_custom_call.1} parent=1 // pred_check
      _
    $region35: #{tpu_custom_call.1} parent=1 // pred_check_branch
      %56 = sbr.rel (0) target = $region37
    $region36: #{tpu_custom_call.1} parent=1 // pred_region
      _
    $region37: #{tpu_custom_call.1} parent=1 // pred_fallthru
      _
    // Predicated region
    $region38: #{tpu_custom_call.1} parent=1 // pred_check
      _
    $region39: #{tpu_custom_call.1} parent=1 // pred_check_branch
      %58 = sbr.rel (0) target = $region41
    $region40: #{tpu_custom_call.1} parent=1 // pred_region
      %59 = dma.done [#allocation4], 4096
    $region41: #{tpu_custom_call.1} parent=1 // pred_fallthru
      _
    // Predicated region
    $region42: #{tpu_custom_call.1} parent=1 // pred_check
      _
    $region43: #{tpu_custom_call.1} parent=1 // pred_check_branch
      %61 = sbr.rel (0) target = $region45
    $region44: #{tpu_custom_call.1} parent=1 // pred_region
      %62 = dma.done [#allocation7], 2048
    $region45: #{tpu_custom_call.1} parent=1 // pred_fallthru
      _
    %v64 = vld [vmem:[%s0] sm:$0xf]
    %v65 = vld [vmem:[%s0 + $0x4] sm:$0xf]
    %v66 = vld [vmem:[%s0 + $0x8] sm:$0xf]
    %v67 = vld [vmem:[%s0 + $0xc] sm:$0xf]
    %v68 = vld [vmem:[%s0 + $0x10] sm:$0xf]
    %v69 = vld [vmem:[%s0 + $0x14] sm:$0xf]
    %v70 = vld [vmem:[%s0 + $0x18] sm:$0xf]
    %v71 = vld [vmem:[%s0 + $0x1c] sm:$0xf]
    %v72 = vld [vmem:[%s0 + $0x20] sm:$0xf]
    %v73 = vld [vmem:[%s0 + $0x24] sm:$0xf]
    %v74 = vld [vmem:[%s0 + $0x28] sm:$0xf]
    %v75 = vld [vmem:[%s0 + $0x2c] sm:$0xf]
    %v76 = vld [vmem:[%s0 + $0x30] sm:$0xf]
    %v77 = vld [vmem:[%s0 + $0x34] sm:$0xf]
    %v78 = vld [vmem:[%s0 + $0x38] sm:$0xf]
    %v79 = vld [vmem:[%s0 + $0x3c] sm:$0xf]
    %v80 = vld [vmem:[%s1] sm:$0xff]
    %v81 = vld [vmem:[%s1 + $0x8] sm:$0xff]
    %v82 = vld [vmem:[%s1 + $0x10] sm:$0xff]
    %v83 = vld [vmem:[%s1 + $0x18] sm:$0xff]
    %v84 = vld [vmem:[%s2] sm:$0x3]
    %v86 = vlaneseq
    %v87 = vshrl.u32 %v86, 7
    %v88 = vsub.s32 0, %v87
    %v89 = vrot.slane %v84, %v88
    %v90 = vlaneseq
    %v91 = vshrl.u32 %v90, 7
    %v92 = vsub.s32 1, %v91
    %v93 = vrot.slane %v84, %v92
    %v112 = vunpack.c.l.b16 %v64
    %v113 = vunpack.c.l.b16 %v65
    %v114 = vunpack.c.l.b16 %v66
    %v115 = vunpack.c.l.b16 %v67
    %v116 = vunpack.c.l.b16 %v68
    %v117 = vunpack.c.l.b16 %v69
    %v118 = vunpack.c.l.b16 %v70
    %v119 = vunpack.c.l.b16 %v71
    %v120 = vunpack.c.l.b16 %v72
    %v121 = vunpack.c.l.b16 %v73
    %v122 = vunpack.c.l.b16 %v74
    %v123 = vunpack.c.l.b16 %v75
    %v124 = vunpack.c.l.b16 %v76
    %v125 = vunpack.c.l.b16 %v77
    %v126 = vunpack.c.l.b16 %v78
    %v127 = vunpack.c.l.b16 %v79
    %v128 = vpack.c.b16 %v113, %v112
    %v129 = vpack.c.b16 %v115, %v114
    %v130 = vpack.c.b16 %v117, %v116
    %v131 = vpack.c.b16 %v119, %v118
    %v132 = vpack.c.b16 %v121, %v120
    %v133 = vpack.c.b16 %v123, %v122
    %v134 = vpack.c.b16 %v125, %v124
    %v135 = vpack.c.b16 %v127, %v126
    %v140 = vunpack.c.l.b16 %v80
    %v141 = vunpack.c.h.b16 %v80
    %v142 = vunpack.c.l.b16 %v81
    %v143 = vunpack.c.h.b16 %v81
    %v144 = vunpack.c.l.b16 %v82
    %v145 = vunpack.c.h.b16 %v82
    %v146 = vunpack.c.l.b16 %v83
    %v147 = vunpack.c.h.b16 %v83
    %v148 = vpack.c.b16 %v142, %v140
    %v149 = vpack.c.b16 %v143, %v141
    %v150 = vpack.c.b16 %v146, %v144
    %v151 = vpack.c.b16 %v147, %v145
    %vm156 = vcmask 261120
    %v158 = vsel %vm156, %v128, 0
    %v161 = vsel %vm156, %v129, 0
    %v164 = vsel %vm156, %v130, 0
    %v167 = vsel %vm156, %v131, 0
    %v170 = vsel %vm156, %v132, 0
    %v173 = vsel %vm156, %v133, 0
    %v176 = vsel %vm156, %v134, 0
    %v179 = vsel %vm156, %v135, 0
    %181 = vmatprep.subr.bf16.mxu0 0
    %182 = vmatpush1.bf16.msra.mxu0 0
    %183 = vmatprep.subr.bf16.mxu0 0
    %184 = vmatpush1.bf16.msra.mxu0 0
    %185 = vmatprep.subr.bf16.mxu0 0
    %186 = vmatpush1.bf16.msra.mxu0 0
    %187 = vmatprep.subr.bf16.mxu0 0
    %188 = vmatpush1.bf16.msra.mxu0 0
    %189 = vmatprep.subr.bf16.mxu0 0
    %190 = vmatpush1.bf16.msra.mxu0 0
    %191 = vmatprep.subr.bf16.mxu0 0
    %192 = vmatpush1.bf16.msra.mxu0 0
    %193 = vmatprep.subr.bf16.mxu0 %v151
    %194 = vmatpush1.bf16.msra.mxu0 %v150
    %195 = vmatprep.subr.bf16.mxu0 %v149
    %196 = vmatpush1.bf16.msra.mxu0 %v148
    %197 = vmatprep.subr.bf16.mxu0 0
    %198 = vmatpush2.bf16.msra.mxu0 0
    %199 = vmatprep.subr.bf16.mxu0 0
    %200 = vmatpush2.bf16.msra.mxu0 0
    %201 = vmatprep.subr.bf16.mxu0 0
    %202 = vmatpush2.bf16.msra.mxu0 0
    %203 = vmatprep.subr.bf16.mxu0 0
    %204 = vmatpush2.bf16.msra.mxu0 0
    %205 = vmatprep.subr.bf16.mxu0 0
    %206 = vmatpush2.bf16.msra.mxu0 0
    %207 = vmatprep.subr.bf16.mxu0 0
    %208 = vmatpush2.bf16.msra.mxu0 0
    %209 = vmatprep.subr.bf16.mxu0 0
    %210 = vmatpush2.bf16.msra.mxu0 0
    %211 = vmatprep.subr.bf16.mxu0 0
    %212 = vmatpush2.bf16.msra.mxu0 0
    %213 = vmatprep.mubr.bf16.mxu0 0
    %214 = vmatmul.mubr.bf16.gmra.mxu0 %v158
    %v215 = vpop.f32.mrf.mxu0
    %v216 = vadd.f32 %v89, %v215
    %v217 = vpop.f32.mrf.mxu0
    %v218 = vadd.f32 %v93, %v217
    %v219 = vpop.f32.mrf.mxu0
    %v220 = vadd.f32 %v89, %v219
    %v221 = vpop.f32.mrf.mxu0
    %v222 = vadd.f32 %v93, %v221
    %223 = vmatprep.mubr.bf16.mxu0 0
    %224 = vmatmul.mubr.bf16.gmra.mxu0 %v161
    %v225 = vpop.f32.mrf.mxu0
    %v226 = vadd.f32 %v89, %v225
    %v227 = vpop.f32.mrf.mxu0
    %v228 = vadd.f32 %v93, %v227
    %v229 = vpop.f32.mrf.mxu0
    %v230 = vadd.f32 %v89, %v229
    %v231 = vpop.f32.mrf.mxu0
    %v232 = vadd.f32 %v93, %v231
    %233 = vmatprep.mubr.bf16.mxu0 0
    %234 = vmatmul.mubr.bf16.gmra.mxu0 %v164
    %v235 = vpop.f32.mrf.mxu0
    %v236 = vadd.f32 %v89, %v235
    %v237 = vpop.f32.mrf.mxu0
    %v238 = vadd.f32 %v93, %v237
    %v239 = vpop.f32.mrf.mxu0
    %v240 = vadd.f32 %v89, %v239
    %v241 = vpop.f32.mrf.mxu0
    %v242 = vadd.f32 %v93, %v241
    %243 = vmatprep.mubr.bf16.mxu0 0
    %244 = vmatmul.mubr.bf16.gmra.mxu0 %v167
    %v245 = vpop.f32.mrf.mxu0
    %v246 = vadd.f32 %v89, %v245
    %v247 = vpop.f32.mrf.mxu0
    %v248 = vadd.f32 %v93, %v247
    %v249 = vpop.f32.mrf.mxu0
    %v250 = vadd.f32 %v89, %v249
    %v251 = vpop.f32.mrf.mxu0
    %v252 = vadd.f32 %v93, %v251
    %253 = vmatprep.mubr.bf16.mxu0 0
    %254 = vmatmul.mubr.bf16.gmra.mxu0 %v170
    %v255 = vpop.f32.mrf.mxu0
    %v256 = vadd.f32 %v89, %v255
    %v257 = vpop.f32.mrf.mxu0
    %v258 = vadd.f32 %v93, %v257
    %v259 = vpop.f32.mrf.mxu0
    %v260 = vadd.f32 %v89, %v259
    %v261 = vpop.f32.mrf.mxu0
    %v262 = vadd.f32 %v93, %v261
    %263 = vmatprep.mubr.bf16.mxu0 0
    %264 = vmatmul.mubr.bf16.gmra.mxu0 %v173
    %v265 = vpop.f32.mrf.mxu0
    %v266 = vadd.f32 %v89, %v265
    %v267 = vpop.f32.mrf.mxu0
    %v268 = vadd.f32 %v93, %v267
    %v269 = vpop.f32.mrf.mxu0
    %v270 = vadd.f32 %v89, %v269
    %v271 = vpop.f32.mrf.mxu0
    %v272 = vadd.f32 %v93, %v271
    %273 = vmatprep.mubr.bf16.mxu0 0
    %274 = vmatmul.mubr.bf16.gmra.mxu0 %v176
    %v275 = vpop.f32.mrf.mxu0
    %v276 = vadd.f32 %v89, %v275
    %v277 = vpop.f32.mrf.mxu0
    %v278 = vadd.f32 %v93, %v277
    %v279 = vpop.f32.mrf.mxu0
    %v280 = vadd.f32 %v89, %v279
    %v281 = vpop.f32.mrf.mxu0
    %v282 = vadd.f32 %v93, %v281
    %283 = vmatprep.mubr.bf16.mxu0 0
    %284 = vmatmul.mubr.bf16.gmra.mxu0 %v179
    %v285 = vpop.f32.mrf.mxu0
    %v286 = vadd.f32 %v89, %v285
    %v287 = vpop.f32.mrf.mxu0
    %v288 = vadd.f32 %v93, %v287
    %v289 = vpop.f32.mrf.mxu0
    %v290 = vadd.f32 %v89, %v289
    %v291 = vpop.f32.mrf.mxu0
    %v292 = vadd.f32 %v93, %v291
    %293 = vdwg.mxu0
    %v294 = vmax.f32 %v216, 0.0
    %v295 = vmax.f32 %v218, 0.0
    %v296 = vmax.f32 %v220, 0.0
    %v297 = vmax.f32 %v222, 0.0
    %v298 = vmax.f32 %v226, 0.0
    %v299 = vmax.f32 %v228, 0.0
    %v300 = vmax.f32 %v230, 0.0
    %v301 = vmax.f32 %v232, 0.0
    %v302 = vmax.f32 %v236, 0.0
    %v303 = vmax.f32 %v238, 0.0
    %v304 = vmax.f32 %v240, 0.0
    %v305 = vmax.f32 %v242, 0.0
    %v306 = vmax.f32 %v246, 0.0
    %v307 = vmax.f32 %v248, 0.0
    %v308 = vmax.f32 %v250, 0.0
    %v309 = vmax.f32 %v252, 0.0
    %v310 = vmax.f32 %v256, 0.0
    %v311 = vmax.f32 %v258, 0.0
    %v312 = vmax.f32 %v260, 0.0
    %v313 = vmax.f32 %v262, 0.0
    %v314 = vmax.f32 %v266, 0.0
    %v315 = vmax.f32 %v268, 0.0
    %v316 = vmax.f32 %v270, 0.0
    %v317 = vmax.f32 %v272, 0.0
    %v318 = vmax.f32 %v276, 0.0
    %v319 = vmax.f32 %v278, 0.0
    %v320 = vmax.f32 %v280, 0.0
    %v321 = vmax.f32 %v282, 0.0
    %v322 = vmax.f32 %v286, 0.0
    %v323 = vmax.f32 %v288, 0.0
    %v324 = vmax.f32 %v290, 0.0
    %v325 = vmax.f32 %v292, 0.0
    %v326 = vadd.f32 %v294, %v295
    %327 = vadd.xlane.f32.xlu0 %v326
    %v328 = vpop.xlane.xlu0 %327
    %v329 = vadd.f32 %v296, %v297
    %330 = vadd.xlane.f32.xlu0 %v329
    %v331 = vpop.xlane.xlu0 %330
    %v332 = vadd.f32 %v298, %v299
    %333 = vadd.xlane.f32.xlu0 %v332
    %v334 = vpop.xlane.xlu0 %333
    %v335 = vadd.f32 %v300, %v301
    %336 = vadd.xlane.f32.xlu0 %v335
    %v337 = vpop.xlane.xlu0 %336
    %v338 = vadd.f32 %v302, %v303
    %339 = vadd.xlane.f32.xlu0 %v338
    %v340 = vpop.xlane.xlu0 %339
    %v341 = vadd.f32 %v304, %v305
    %342 = vadd.xlane.f32.xlu0 %v341
    %v343 = vpop.xlane.xlu0 %342
    %v344 = vadd.f32 %v306, %v307
    %345 = vadd.xlane.f32.xlu0 %v344
    %v346 = vpop.xlane.xlu0 %345
    %v347 = vadd.f32 %v308, %v309
    %348 = vadd.xlane.f32.xlu0 %v347
    %v349 = vpop.xlane.xlu0 %348
    %v350 = vadd.f32 %v310, %v311
    %351 = vadd.xlane.f32.xlu0 %v350
    %v352 = vpop.xlane.xlu0 %351
    %v353 = vadd.f32 %v312, %v313
    %354 = vadd.xlane.f32.xlu0 %v353
    %v355 = vpop.xlane.xlu0 %354
    %v356 = vadd.f32 %v314, %v315
    %357 = vadd.xlane.f32.xlu0 %v356
    %v358 = vpop.xlane.xlu0 %357
    %v359 = vadd.f32 %v316, %v317
    %360 = vadd.xlane.f32.xlu0 %v359
    %v361 = vpop.xlane.xlu0 %360
    %v362 = vadd.f32 %v318, %v319
    %363 = vadd.xlane.f32.xlu0 %v362
    %v364 = vpop.xlane.xlu0 %363
    %v365 = vadd.f32 %v320, %v321
    %366 = vadd.xlane.f32.xlu0 %v365
    %v367 = vpop.xlane.xlu0 %366
    %v368 = vadd.f32 %v322, %v323
    %369 = vadd.xlane.f32.xlu0 %v368
    %v370 = vpop.xlane.xlu0 %369
    %v371 = vadd.f32 %v324, %v325
    %372 = vadd.xlane.f32.xlu0 %v371
    %v373 = vpop.xlane.xlu0 %372
    %v374 = vrcp.pop 256.0
    %v375 = vmul.f32 %v328, %v374
    %v376 = vmul.f32 %v331, %v374
    %v377 = vmul.f32 %v334, %v374
    %v378 = vmul.f32 %v337, %v374
    %v379 = vmul.f32 %v340, %v374
    %v380 = vmul.f32 %v343, %v374
    %v381 = vmul.f32 %v346, %v374
    %v382 = vmul.f32 %v349, %v374
    %v383 = vmul.f32 %v352, %v374
    %v384 = vmul.f32 %v355, %v374
    %v385 = vmul.f32 %v358, %v374
    %v386 = vmul.f32 %v361, %v374
    %v387 = vmul.f32 %v364, %v374
    %v388 = vmul.f32 %v367, %v374
    %v389 = vmul.f32 %v370, %v374
    %v390 = vmul.f32 %v373, %v374
    %v391 = vmul.f32 %v294, %v294
    %v392 = vmul.f32 %v295, %v295
    %v393 = vmul.f32 %v296, %v296
    %v394 = vmul.f32 %v297, %v297
    %v395 = vmul.f32 %v298, %v298
    %v396 = vmul.f32 %v299, %v299
    %v397 = vmul.f32 %v300, %v300
    %v398 = vmul.f32 %v301, %v301
    %v399 = vmul.f32 %v302, %v302
    %v400 = vmul.f32 %v303, %v303
    %v401 = vmul.f32 %v304, %v304
    %v402 = vmul.f32 %v305, %v305
    %v403 = vmul.f32 %v306, %v306
    %v404 = vmul.f32 %v307, %v307
    %v405 = vmul.f32 %v308, %v308
    %v406 = vmul.f32 %v309, %v309
    %v407 = vmul.f32 %v310, %v310
    %v408 = vmul.f32 %v311, %v311
    %v409 = vmul.f32 %v312, %v312
    %v410 = vmul.f32 %v313, %v313
    %v411 = vmul.f32 %v314, %v314
    %v412 = vmul.f32 %v315, %v315
    %v413 = vmul.f32 %v316, %v316
    %v414 = vmul.f32 %v317, %v317
    %v415 = vmul.f32 %v318, %v318
    %v416 = vmul.f32 %v319, %v319
    %v417 = vmul.f32 %v320, %v320
    %v418 = vmul.f32 %v321, %v321
    %v419 = vmul.f32 %v322, %v322
    %v420 = vmul.f32 %v323, %v323
    %v421 = vmul.f32 %v324, %v324
    %v422 = vmul.f32 %v325, %v325
    %v423 = vadd.f32 %v391, %v392
    %424 = vadd.xlane.f32.xlu0 %v423
    %v425 = vpop.xlane.xlu0 %424
    %v426 = vadd.f32 %v393, %v394
    %427 = vadd.xlane.f32.xlu0 %v426
    %v428 = vpop.xlane.xlu0 %427
    %v429 = vadd.f32 %v395, %v396
    %430 = vadd.xlane.f32.xlu0 %v429
    %v431 = vpop.xlane.xlu0 %430
    %v432 = vadd.f32 %v397, %v398
    %433 = vadd.xlane.f32.xlu0 %v432
    %v434 = vpop.xlane.xlu0 %433
    %v435 = vadd.f32 %v399, %v400
    %436 = vadd.xlane.f32.xlu0 %v435
    %v437 = vpop.xlane.xlu0 %436
    %v438 = vadd.f32 %v401, %v402
    %439 = vadd.xlane.f32.xlu0 %v438
    %v440 = vpop.xlane.xlu0 %439
    %v441 = vadd.f32 %v403, %v404
    %442 = vadd.xlane.f32.xlu0 %v441
    %v443 = vpop.xlane.xlu0 %442
    %v444 = vadd.f32 %v405, %v406
    %445 = vadd.xlane.f32.xlu0 %v444
    %v446 = vpop.xlane.xlu0 %445
    %v447 = vadd.f32 %v407, %v408
    %448 = vadd.xlane.f32.xlu0 %v447
    %v449 = vpop.xlane.xlu0 %448
    %v450 = vadd.f32 %v409, %v410
    %451 = vadd.xlane.f32.xlu0 %v450
    %v452 = vpop.xlane.xlu0 %451
    %v453 = vadd.f32 %v411, %v412
    %454 = vadd.xlane.f32.xlu0 %v453
    %v455 = vpop.xlane.xlu0 %454
    %v456 = vadd.f32 %v413, %v414
    %457 = vadd.xlane.f32.xlu0 %v456
    %v458 = vpop.xlane.xlu0 %457
    %v459 = vadd.f32 %v415, %v416
    %460 = vadd.xlane.f32.xlu0 %v459
    %v461 = vpop.xlane.xlu0 %460
    %v462 = vadd.f32 %v417, %v418
    %463 = vadd.xlane.f32.xlu0 %v462
    %v464 = vpop.xlane.xlu0 %463
    %v465 = vadd.f32 %v419, %v420
    %466 = vadd.xlane.f32.xlu0 %v465
    %v467 = vpop.xlane.xlu0 %466
    %v468 = vadd.f32 %v421, %v422
    %469 = vadd.xlane.f32.xlu0 %v468
    %v470 = vpop.xlane.xlu0 %469
    %v471 = vmul.f32 %v425, %v374
    %v472 = vmul.f32 %v428, %v374
    %v473 = vmul.f32 %v431, %v374
    %v474 = vmul.f32 %v434, %v374
    %v475 = vmul.f32 %v437, %v374
    %v476 = vmul.f32 %v440, %v374
    %v477 = vmul.f32 %v443, %v374
    %v478 = vmul.f32 %v446, %v374
    %v479 = vmul.f32 %v449, %v374
    %v480 = vmul.f32 %v452, %v374
    %v481 = vmul.f32 %v455, %v374
    %v482 = vmul.f32 %v458, %v374
    %v483 = vmul.f32 %v461, %v374
    %v484 = vmul.f32 %v464, %v374
    %v485 = vmul.f32 %v467, %v374
    %v486 = vmul.f32 %v470, %v374
    %v487 = vmul.f32 %v375, %v375
    %v488 = vmul.f32 %v376, %v376
    %v489 = vmul.f32 %v377, %v377
    %v490 = vmul.f32 %v378, %v378
    %v491 = vmul.f32 %v379, %v379
    %v492 = vmul.f32 %v380, %v380
    %v493 = vmul.f32 %v381, %v381
    %v494 = vmul.f32 %v382, %v382
    %v495 = vmul.f32 %v383, %v383
    %v496 = vmul.f32 %v384, %v384
    %v497 = vmul.f32 %v385, %v385
    %v498 = vmul.f32 %v386, %v386
    %v499 = vmul.f32 %v387, %v387
    %v500 = vmul.f32 %v388, %v388
    %v501 = vmul.f32 %v389, %v389
    %v502 = vmul.f32 %v390, %v390
    %v503 = vsub.f32 %v471, %v487
    %v504 = vsub.f32 %v472, %v488
    %v505 = vsub.f32 %v473, %v489
    %v506 = vsub.f32 %v474, %v490
    %v507 = vsub.f32 %v475, %v491
    %v508 = vsub.f32 %v476, %v492
    %v509 = vsub.f32 %v477, %v493
    %v510 = vsub.f32 %v478, %v494
    %v511 = vsub.f32 %v479, %v495
    %v512 = vsub.f32 %v480, %v496
    %v513 = vsub.f32 %v481, %v497
    %v514 = vsub.f32 %v482, %v498
    %v515 = vsub.f32 %v483, %v499
    %v516 = vsub.f32 %v484, %v500
    %v517 = vsub.f32 %v485, %v501
    %v518 = vsub.f32 %v486, %v502
    %v519 = vmax.f32 %v503, 0.0
    %v520 = vmax.f32 %v504, 0.0
    %v521 = vmax.f32 %v505, 0.0
    %v522 = vmax.f32 %v506, 0.0
    %v523 = vmax.f32 %v507, 0.0
    %v524 = vmax.f32 %v508, 0.0
    %v525 = vmax.f32 %v509, 0.0
    %v526 = vmax.f32 %v510, 0.0
    %v527 = vmax.f32 %v511, 0.0
    %v528 = vmax.f32 %v512, 0.0
    %v529 = vmax.f32 %v513, 0.0
    %v530 = vmax.f32 %v514, 0.0
    %v531 = vmax.f32 %v515, 0.0
    %v532 = vmax.f32 %v516, 0.0
    %v533 = vmax.f32 %v517, 0.0
    %v534 = vmax.f32 %v518, 0.0
    %v535 = vsub.f32 %v294, %v375
    %v536 = vsub.f32 %v295, %v375
    %v537 = vsub.f32 %v296, %v376
    %v538 = vsub.f32 %v297, %v376
    %v539 = vsub.f32 %v298, %v377
    %v540 = vsub.f32 %v299, %v377
    %v541 = vsub.f32 %v300, %v378
    %v542 = vsub.f32 %v301, %v378
    %v543 = vsub.f32 %v302, %v379
    %v544 = vsub.f32 %v303, %v379
    %v545 = vsub.f32 %v304, %v380
    %v546 = vsub.f32 %v305, %v380
    %v547 = vsub.f32 %v306, %v381
    %v548 = vsub.f32 %v307, %v381
    %v549 = vsub.f32 %v308, %v382
    %v550 = vsub.f32 %v309, %v382
    %v551 = vsub.f32 %v310, %v383
    %v552 = vsub.f32 %v311, %v383
    %v553 = vsub.f32 %v312, %v384
    %v554 = vsub.f32 %v313, %v384
    %v555 = vsub.f32 %v314, %v385
    %v556 = vsub.f32 %v315, %v385
    %v557 = vsub.f32 %v316, %v386
    %v558 = vsub.f32 %v317, %v386
    %v559 = vsub.f32 %v318, %v387
    %v560 = vsub.f32 %v319, %v387
    %v561 = vsub.f32 %v320, %v388
    %v562 = vsub.f32 %v321, %v388
    %v563 = vsub.f32 %v322, %v389
    %v564 = vsub.f32 %v323, %v389
    %v565 = vsub.f32 %v324, %v390
    %v566 = vsub.f32 %v325, %v390
    %v567 = vadd.f32 %v519, 1e-05
    %v568 = vadd.f32 %v520, 1e-05
    %v569 = vadd.f32 %v521, 1e-05
    %v570 = vadd.f32 %v522, 1e-05
    %v571 = vadd.f32 %v523, 1e-05
    %v572 = vadd.f32 %v524, 1e-05
    %v573 = vadd.f32 %v525, 1e-05
    %v574 = vadd.f32 %v526, 1e-05
    %v575 = vadd.f32 %v527, 1e-05
    %v576 = vadd.f32 %v528, 1e-05
    %v577 = vadd.f32 %v529, 1e-05
    %v578 = vadd.f32 %v530, 1e-05
    %v579 = vadd.f32 %v531, 1e-05
    %v580 = vadd.f32 %v532, 1e-05
    %v581 = vadd.f32 %v533, 1e-05
    %v582 = vadd.f32 %v534, 1e-05
    %v583 = vrsqrt.pop %v567
    %v584 = vrsqrt.pop %v568
    %v585 = vrsqrt.pop %v569
    %v586 = vrsqrt.pop %v570
    %v587 = vrsqrt.pop %v571
    %v588 = vrsqrt.pop %v572
    %v589 = vrsqrt.pop %v573
    %v590 = vrsqrt.pop %v574
    %v591 = vrsqrt.pop %v575
    %v592 = vrsqrt.pop %v576
    %v593 = vrsqrt.pop %v577
    %v594 = vrsqrt.pop %v578
    %v595 = vrsqrt.pop %v579
    %v596 = vrsqrt.pop %v580
    %v597 = vrsqrt.pop %v581
    %v598 = vrsqrt.pop %v582
    %v599 = vmul.f32 %v535, %v583
    %v600 = vmul.f32 %v536, %v583
    %v601 = vmul.f32 %v537, %v584
    %v602 = vmul.f32 %v538, %v584
    %v603 = vmul.f32 %v539, %v585
    %v604 = vmul.f32 %v540, %v585
    %v605 = vmul.f32 %v541, %v586
    %v606 = vmul.f32 %v542, %v586
    %v607 = vmul.f32 %v543, %v587
    %v608 = vmul.f32 %v544, %v587
    %v609 = vmul.f32 %v545, %v588
    %v610 = vmul.f32 %v546, %v588
    %v611 = vmul.f32 %v547, %v589
    %v612 = vmul.f32 %v548, %v589
    %v613 = vmul.f32 %v549, %v590
    %v614 = vmul.f32 %v550, %v590
    %v615 = vmul.f32 %v551, %v591
    %v616 = vmul.f32 %v552, %v591
    %v617 = vmul.f32 %v553, %v592
    %v618 = vmul.f32 %v554, %v592
    %v619 = vmul.f32 %v555, %v593
    %v620 = vmul.f32 %v556, %v593
    %v621 = vmul.f32 %v557, %v594
    %v622 = vmul.f32 %v558, %v594
    %v623 = vmul.f32 %v559, %v595
    %v624 = vmul.f32 %v560, %v595
    %v625 = vmul.f32 %v561, %v596
    %v626 = vmul.f32 %v562, %v596
    %v627 = vmul.f32 %v563, %v597
    %v628 = vmul.f32 %v564, %v597
    %v629 = vmul.f32 %v565, %v598
    %v630 = vmul.f32 %v566, %v598
    %v631 = vpack.c.bf16 %v601, %v599
    %v632 = vpack.c.bf16 %v602, %v600
    %v633 = vpack.c.bf16 %v605, %v603
    %v634 = vpack.c.bf16 %v606, %v604
    %v635 = vpack.c.bf16 %v609, %v607
    %v636 = vpack.c.bf16 %v610, %v608
    %v637 = vpack.c.bf16 %v613, %v611
    %v638 = vpack.c.bf16 %v614, %v612
    %v639 = vpack.c.bf16 %v617, %v615
    %v640 = vpack.c.bf16 %v618, %v616
    %v641 = vpack.c.bf16 %v621, %v619
    %v642 = vpack.c.bf16 %v622, %v620
    %v643 = vpack.c.bf16 %v625, %v623
    %v644 = vpack.c.bf16 %v626, %v624
    %v645 = vpack.c.bf16 %v629, %v627
    %v646 = vpack.c.bf16 %v630, %v628
    %v647 = vld [vmem:[#allocation3] sm:$0xff]
    %v648 = vld [vmem:[#allocation3 + $0x8] sm:$0xff]
    %v649 = vld [vmem:[#allocation3 + $0x10] sm:$0xff]
    %v650 = vld [vmem:[#allocation3 + $0x18] sm:$0xff]
    %v651 = vld [vmem:[#allocation3 + $0x20] sm:$0xff]
    %v652 = vld [vmem:[#allocation3 + $0x28] sm:$0xff]
    %v653 = vld [vmem:[#allocation3 + $0x30] sm:$0xff]
    %v654 = vld [vmem:[#allocation3 + $0x38] sm:$0xff]
    %v655 = vld [vmem:[#allocation3 + $0x40] sm:$0xff]
    %v656 = vld [vmem:[#allocation3 + $0x48] sm:$0xff]
    %v657 = vld [vmem:[#allocation3 + $0x50] sm:$0xff]
    %v658 = vld [vmem:[#allocation3 + $0x58] sm:$0xff]
    %v659 = vld [vmem:[#allocation3 + $0x60] sm:$0xff]
    %v660 = vld [vmem:[#allocation3 + $0x68] sm:$0xff]
    %v661 = vld [vmem:[#allocation3 + $0x70] sm:$0xff]
    %v662 = vld [vmem:[#allocation3 + $0x78] sm:$0xff]
    %v663 = vld [vmem:[#allocation3 + $0x80] sm:$0xff]
    %v664 = vld [vmem:[#allocation3 + $0x88] sm:$0xff]
    %v665 = vld [vmem:[#allocation3 + $0x90] sm:$0xff]
    %v666 = vld [vmem:[#allocation3 + $0x98] sm:$0xff]
    %v667 = vld [vmem:[#allocation3 + $0xa0] sm:$0xff]
    %v668 = vld [vmem:[#allocation3 + $0xa8] sm:$0xff]
    %v669 = vld [vmem:[#allocation3 + $0xb0] sm:$0xff]
    %v670 = vld [vmem:[#allocation3 + $0xb8] sm:$0xff]
    %v671 = vld [vmem:[#allocation3 + $0xc0] sm:$0xff]
    %v672 = vld [vmem:[#allocation3 + $0xc8] sm:$0xff]
    %v673 = vld [vmem:[#allocation3 + $0xd0] sm:$0xff]
    %v674 = vld [vmem:[#allocation3 + $0xd8] sm:$0xff]
    %v675 = vld [vmem:[#allocation3 + $0xe0] sm:$0xff]
    %v676 = vld [vmem:[#allocation3 + $0xe8] sm:$0xff]
    %v677 = vld [vmem:[#allocation3 + $0xf0] sm:$0xff]
    %v678 = vld [vmem:[#allocation3 + $0xf8] sm:$0xff]
    %v679 = vld [vmem:[%s4] sm:$0x3]
    %v681 = vlaneseq
    %v682 = vshrl.u32 %v681, 7
    %v683 = vsub.s32 0, %v682
    %v684 = vrot.slane %v679, %v683
    %v685 = vlaneseq
    %v686 = vshrl.u32 %v685, 7
    %v687 = vsub.s32 1, %v686
    %v688 = vrot.slane %v679, %v687
    %v723 = vunpack.c.l.b16 %v647
    %v724 = vunpack.c.h.b16 %v647
    %v725 = vunpack.c.l.b16 %v648
    %v726 = vunpack.c.h.b16 %v648
    %v727 = vunpack.c.l.b16 %v649
    %v728 = vunpack.c.h.b16 %v649
    %v729 = vunpack.c.l.b16 %v650
    %v730 = vunpack.c.h.b16 %v650
    %v731 = vunpack.c.l.b16 %v651
    %v732 = vunpack.c.h.b16 %v651
    %v733 = vunpack.c.l.b16 %v652
    %v734 = vunpack.c.h.b16 %v652
    %v735 = vunpack.c.l.b16 %v653
    %v736 = vunpack.c.h.b16 %v653
    %v737 = vunpack.c.l.b16 %v654
    %v738 = vunpack.c.h.b16 %v654
    %v739 = vunpack.c.l.b16 %v655
    %v740 = vunpack.c.h.b16 %v655
    %v741 = vunpack.c.l.b16 %v656
    %v742 = vunpack.c.h.b16 %v656
    %v743 = vunpack.c.l.b16 %v657
    %v744 = vunpack.c.h.b16 %v657
    %v745 = vunpack.c.l.b16 %v658
    %v746 = vunpack.c.h.b16 %v658
    %v747 = vunpack.c.l.b16 %v659
    %v748 = vunpack.c.h.b16 %v659
    %v749 = vunpack.c.l.b16 %v660
    %v750 = vunpack.c.h.b16 %v660
    %v751 = vunpack.c.l.b16 %v661
    %v752 = vunpack.c.h.b16 %v661
    %v753 = vunpack.c.l.b16 %v662
    %v754 = vunpack.c.h.b16 %v662
    %v755 = vunpack.c.l.b16 %v663
    %v756 = vunpack.c.h.b16 %v663
    %v757 = vunpack.c.l.b16 %v664
    %v758 = vunpack.c.h.b16 %v664
    %v759 = vunpack.c.l.b16 %v665
    %v760 = vunpack.c.h.b16 %v665
    %v761 = vunpack.c.l.b16 %v666
    %v762 = vunpack.c.h.b16 %v666
    %v763 = vunpack.c.l.b16 %v667
    %v764 = vunpack.c.h.b16 %v667
    %v765 = vunpack.c.l.b16 %v668
    %v766 = vunpack.c.h.b16 %v668
    %v767 = vunpack.c.l.b16 %v669
    %v768 = vunpack.c.h.b16 %v669
    %v769 = vunpack.c.l.b16 %v670
    %v770 = vunpack.c.h.b16 %v670
    %v771 = vunpack.c.l.b16 %v671
    %v772 = vunpack.c.h.b16 %v671
    %v773 = vunpack.c.l.b16 %v672
    %v774 = vunpack.c.h.b16 %v672
    %v775 = vunpack.c.l.b16 %v673
    %v776 = vunpack.c.h.b16 %v673
    %v777 = vunpack.c.l.b16 %v674
    %v778 = vunpack.c.h.b16 %v674
    %v779 = vunpack.c.l.b16 %v675
    %v780 = vunpack.c.h.b16 %v675
    %v781 = vunpack.c.l.b16 %v676
    %v782 = vunpack.c.h.b16 %v676
    %v783 = vunpack.c.l.b16 %v677
    %v784 = vunpack.c.h.b16 %v677
    %v785 = vunpack.c.l.b16 %v678
    %v786 = vunpack.c.h.b16 %v678
    %v787 = vpack.c.b16 %v725, %v723
    %v788 = vpack.c.b16 %v726, %v724
    %v789 = vpack.c.b16 %v729, %v727
    %v790 = vpack.c.b16 %v730, %v728
    %v791 = vpack.c.b16 %v733, %v731
    %v792 = vpack.c.b16 %v734, %v732
    %v793 = vpack.c.b16 %v737, %v735
    %v794 = vpack.c.b16 %v738, %v736
    %v795 = vpack.c.b16 %v741, %v739
    %v796 = vpack.c.b16 %v742, %v740
    %v797 = vpack.c.b16 %v745, %v743
    %v798 = vpack.c.b16 %v746, %v744
    %v799 = vpack.c.b16 %v749, %v747
    %v800 = vpack.c.b16 %v750, %v748
    %v801 = vpack.c.b16 %v753, %v751
    %v802 = vpack.c.b16 %v754, %v752
    %v803 = vpack.c.b16 %v757, %v755
    %v804 = vpack.c.b16 %v758, %v756
    %v805 = vpack.c.b16 %v761, %v759
    %v806 = vpack.c.b16 %v762, %v760
    %v807 = vpack.c.b16 %v765, %v763
    %v808 = vpack.c.b16 %v766, %v764
    %v809 = vpack.c.b16 %v769, %v767
    %v810 = vpack.c.b16 %v770, %v768
    %v811 = vpack.c.b16 %v773, %v771
    %v812 = vpack.c.b16 %v774, %v772
    %v813 = vpack.c.b16 %v777, %v775
    %v814 = vpack.c.b16 %v778, %v776
    %v815 = vpack.c.b16 %v781, %v779
    %v816 = vpack.c.b16 %v782, %v780
    %v817 = vpack.c.b16 %v785, %v783
    %v818 = vpack.c.b16 %v786, %v784
    %851 = vmatprep.subr.bf16.mxu0 %v802
    %852 = vmatpush1.bf16.msra.mxu0 %v801
    %853 = vmatprep.subr.bf16.mxu0 %v800
    %854 = vmatpush1.bf16.msra.mxu0 %v799
    %855 = vmatprep.subr.bf16.mxu0 %v798
    %856 = vmatpush1.bf16.msra.mxu0 %v797
    %857 = vmatprep.subr.bf16.mxu0 %v796
    %858 = vmatpush1.bf16.msra.mxu0 %v795
    %859 = vmatprep.subr.bf16.mxu0 %v794
    %860 = vmatpush1.bf16.msra.mxu0 %v793
    %861 = vmatprep.subr.bf16.mxu0 %v792
    %862 = vmatpush1.bf16.msra.mxu0 %v791
    %863 = vmatprep.subr.bf16.mxu0 %v790
    %864 = vmatpush1.bf16.msra.mxu0 %v789
    %865 = vmatprep.subr.bf16.mxu0 %v788
    %866 = vmatpush1.bf16.msra.mxu0 %v787
    %867 = vmatprep.subr.bf16.mxu0 %v818
    %868 = vmatpush2.bf16.msra.mxu0 %v817
    %869 = vmatprep.subr.bf16.mxu0 %v816
    %870 = vmatpush2.bf16.msra.mxu0 %v815
    %871 = vmatprep.subr.bf16.mxu0 %v814
    %872 = vmatpush2.bf16.msra.mxu0 %v813
    %873 = vmatprep.subr.bf16.mxu0 %v812
    %874 = vmatpush2.bf16.msra.mxu0 %v811
    %875 = vmatprep.subr.bf16.mxu0 %v810
    %876 = vmatpush2.bf16.msra.mxu0 %v809
    %877 = vmatprep.subr.bf16.mxu0 %v808
    %878 = vmatpush2.bf16.msra.mxu0 %v807
    %879 = vmatprep.subr.bf16.mxu0 %v806
    %880 = vmatpush2.bf16.msra.mxu0 %v805
    %881 = vmatprep.subr.bf16.mxu0 %v804
    %882 = vmatpush2.bf16.msra.mxu0 %v803
    %883 = vmatprep.mubr.bf16.mxu0 %v632
    %884 = vmatmul.mubr.bf16.gmra.mxu0 %v631
    %v885 = vpop.f32.mrf.mxu0
    %v886 = vadd.f32 %v684, %v885
    %v887 = vpop.f32.mrf.mxu0
    %v888 = vadd.f32 %v688, %v887
    %v889 = vpop.f32.mrf.mxu0
    %v890 = vadd.f32 %v684, %v889
    %v891 = vpop.f32.mrf.mxu0
    %v892 = vadd.f32 %v688, %v891
    %893 = vmatprep.mubr.bf16.mxu0 %v634
    %894 = vmatmul.mubr.bf16.gmra.mxu0 %v633
    %v895 = vpop.f32.mrf.mxu0
    %v896 = vadd.f32 %v684, %v895
    %v897 = vpop.f32.mrf.mxu0
    %v898 = vadd.f32 %v688, %v897
    %v899 = vpop.f32.mrf.mxu0
    %v900 = vadd.f32 %v684, %v899
    %v901 = vpop.f32.mrf.mxu0
    %v902 = vadd.f32 %v688, %v901
    %903 = vmatprep.mubr.bf16.mxu0 %v636
    %904 = vmatmul.mubr.bf16.gmra.mxu0 %v635
    %v905 = vpop.f32.mrf.mxu0
    %v906 = vadd.f32 %v684, %v905
    %v907 = vpop.f32.mrf.mxu0
    %v908 = vadd.f32 %v688, %v907
    %v909 = vpop.f32.mrf.mxu0
    %v910 = vadd.f32 %v684, %v909
    %v911 = vpop.f32.mrf.mxu0
    %v912 = vadd.f32 %v688, %v911
    %913 = vmatprep.mubr.bf16.mxu0 %v638
    %914 = vmatmul.mubr.bf16.gmra.mxu0 %v637
    %v915 = vpop.f32.mrf.mxu0
    %v916 = vadd.f32 %v684, %v915
    %v917 = vpop.f32.mrf.mxu0
    %v918 = vadd.f32 %v688, %v917
    %v919 = vpop.f32.mrf.mxu0
    %v920 = vadd.f32 %v684, %v919
    %v921 = vpop.f32.mrf.mxu0
    %v922 = vadd.f32 %v688, %v921
    %923 = vmatprep.mubr.bf16.mxu0 %v640
    %924 = vmatmul.mubr.bf16.gmra.mxu0 %v639
    %v925 = vpop.f32.mrf.mxu0
    %v926 = vadd.f32 %v684, %v925
    %v927 = vpop.f32.mrf.mxu0
    %v928 = vadd.f32 %v688, %v927
    %v929 = vpop.f32.mrf.mxu0
    %v930 = vadd.f32 %v684, %v929
    %v931 = vpop.f32.mrf.mxu0
    %v932 = vadd.f32 %v688, %v931
    %933 = vmatprep.mubr.bf16.mxu0 %v642
    %934 = vmatmul.mubr.bf16.gmra.mxu0 %v641
    %v935 = vpop.f32.mrf.mxu0
    %v936 = vadd.f32 %v684, %v935
    %v937 = vpop.f32.mrf.mxu0
    %v938 = vadd.f32 %v688, %v937
    %v939 = vpop.f32.mrf.mxu0
    %v940 = vadd.f32 %v684, %v939
    %v941 = vpop.f32.mrf.mxu0
    %v942 = vadd.f32 %v688, %v941
    %943 = vmatprep.mubr.bf16.mxu0 %v644
    %944 = vmatmul.mubr.bf16.gmra.mxu0 %v643
    %v945 = vpop.f32.mrf.mxu0
    %v946 = vadd.f32 %v684, %v945
    %v947 = vpop.f32.mrf.mxu0
    %v948 = vadd.f32 %v688, %v947
    %v949 = vpop.f32.mrf.mxu0
    %v950 = vadd.f32 %v684, %v949
    %v951 = vpop.f32.mrf.mxu0
    %v952 = vadd.f32 %v688, %v951
    %953 = vmatprep.mubr.bf16.mxu0 %v646
    %954 = vmatmul.mubr.bf16.gmra.mxu0 %v645
    %v955 = vpop.f32.mrf.mxu0
    %v956 = vadd.f32 %v684, %v955
    %v957 = vpop.f32.mrf.mxu0
    %v958 = vadd.f32 %v688, %v957
    %v959 = vpop.f32.mrf.mxu0
    %v960 = vadd.f32 %v684, %v959
    %v961 = vpop.f32.mrf.mxu0
    %v962 = vadd.f32 %v688, %v961
    %963 = vdwg.mxu0
    %v964 = vmax.f32 %v886, 0.0
    %v965 = vmax.f32 %v888, 0.0
    %v966 = vmax.f32 %v890, 0.0
    %v967 = vmax.f32 %v892, 0.0
    %v968 = vmax.f32 %v896, 0.0
    %v969 = vmax.f32 %v898, 0.0
    %v970 = vmax.f32 %v900, 0.0
    %v971 = vmax.f32 %v902, 0.0
    %v972 = vmax.f32 %v906, 0.0
    %v973 = vmax.f32 %v908, 0.0
    %v974 = vmax.f32 %v910, 0.0
    %v975 = vmax.f32 %v912, 0.0
    %v976 = vmax.f32 %v916, 0.0
    %v977 = vmax.f32 %v918, 0.0
    %v978 = vmax.f32 %v920, 0.0
    %v979 = vmax.f32 %v922, 0.0
    %v980 = vmax.f32 %v926, 0.0
    %v981 = vmax.f32 %v928, 0.0
    %v982 = vmax.f32 %v930, 0.0
    %v983 = vmax.f32 %v932, 0.0
    %v984 = vmax.f32 %v936, 0.0
    %v985 = vmax.f32 %v938, 0.0
    %v986 = vmax.f32 %v940, 0.0
    %v987 = vmax.f32 %v942, 0.0
    %v988 = vmax.f32 %v946, 0.0
    %v989 = vmax.f32 %v948, 0.0
    %v990 = vmax.f32 %v950, 0.0
    %v991 = vmax.f32 %v952, 0.0
    %v992 = vmax.f32 %v956, 0.0
    %v993 = vmax.f32 %v958, 0.0
    %v994 = vmax.f32 %v960, 0.0
    %v995 = vmax.f32 %v962, 0.0
    %v996 = vadd.f32 %v964, %v965
    %997 = vadd.xlane.f32.xlu0 %v996
    %v998 = vpop.xlane.xlu0 %997
    %v999 = vadd.f32 %v966, %v967
    %1000 = vadd.xlane.f32.xlu0 %v999
    %v1001 = vpop.xlane.xlu0 %1000
    %v1002 = vadd.f32 %v968, %v969
    %1003 = vadd.xlane.f32.xlu0 %v1002
    %v1004 = vpop.xlane.xlu0 %1003
    %v1005 = vadd.f32 %v970, %v971
    %1006 = vadd.xlane.f32.xlu0 %v1005
    %v1007 = vpop.xlane.xlu0 %1006
    %v1008 = vadd.f32 %v972, %v973
    %1009 = vadd.xlane.f32.xlu0 %v1008
    %v1010 = vpop.xlane.xlu0 %1009
    %v1011 = vadd.f32 %v974, %v975
    %1012 = vadd.xlane.f32.xlu0 %v1011
    %v1013 = vpop.xlane.xlu0 %1012
    %v1014 = vadd.f32 %v976, %v977
    %1015 = vadd.xlane.f32.xlu0 %v1014
    %v1016 = vpop.xlane.xlu0 %1015
    %v1017 = vadd.f32 %v978, %v979
    %1018 = vadd.xlane.f32.xlu0 %v1017
    %v1019 = vpop.xlane.xlu0 %1018
    %v1020 = vadd.f32 %v980, %v981
    %1021 = vadd.xlane.f32.xlu0 %v1020
    %v1022 = vpop.xlane.xlu0 %1021
    %v1023 = vadd.f32 %v982, %v983
    %1024 = vadd.xlane.f32.xlu0 %v1023
    %v1025 = vpop.xlane.xlu0 %1024
    %v1026 = vadd.f32 %v984, %v985
    %1027 = vadd.xlane.f32.xlu0 %v1026
    %v1028 = vpop.xlane.xlu0 %1027
    %v1029 = vadd.f32 %v986, %v987
    %1030 = vadd.xlane.f32.xlu0 %v1029
    %v1031 = vpop.xlane.xlu0 %1030
    %v1032 = vadd.f32 %v988, %v989
    %1033 = vadd.xlane.f32.xlu0 %v1032
    %v1034 = vpop.xlane.xlu0 %1033
    %v1035 = vadd.f32 %v990, %v991
    %1036 = vadd.xlane.f32.xlu0 %v1035
    %v1037 = vpop.xlane.xlu0 %1036
    %v1038 = vadd.f32 %v992, %v993
    %1039 = vadd.xlane.f32.xlu0 %v1038
    %v1040 = vpop.xlane.xlu0 %1039
    %v1041 = vadd.f32 %v994, %v995
    %1042 = vadd.xlane.f32.xlu0 %v1041
    %v1043 = vpop.xlane.xlu0 %1042
    %v1044 = vmul.f32 %v998, %v374
    %v1045 = vmul.f32 %v1001, %v374
    %v1046 = vmul.f32 %v1004, %v374
    %v1047 = vmul.f32 %v1007, %v374
    %v1048 = vmul.f32 %v1010, %v374
    %v1049 = vmul.f32 %v1013, %v374
    %v1050 = vmul.f32 %v1016, %v374
    %v1051 = vmul.f32 %v1019, %v374
    %v1052 = vmul.f32 %v1022, %v374
    %v1053 = vmul.f32 %v1025, %v374
    %v1054 = vmul.f32 %v1028, %v374
    %v1055 = vmul.f32 %v1031, %v374
    %v1056 = vmul.f32 %v1034, %v374
    %v1057 = vmul.f32 %v1037, %v374
    %v1058 = vmul.f32 %v1040, %v374
    %v1059 = vmul.f32 %v1043, %v374
    %v1060 = vmul.f32 %v964, %v964
    %v1061 = vmul.f32 %v965, %v965
    %v1062 = vmul.f32 %v966, %v966
    %v1063 = vmul.f32 %v967, %v967
    %v1064 = vmul.f32 %v968, %v968
    %v1065 = vmul.f32 %v969, %v969
    %v1066 = vmul.f32 %v970, %v970
    %v1067 = vmul.f32 %v971, %v971
    %v1068 = vmul.f32 %v972, %v972
    %v1069 = vmul.f32 %v973, %v973
    %v1070 = vmul.f32 %v974, %v974
    %v1071 = vmul.f32 %v975, %v975
    %v1072 = vmul.f32 %v976, %v976
    %v1073 = vmul.f32 %v977, %v977
    %v1074 = vmul.f32 %v978, %v978
    %v1075 = vmul.f32 %v979, %v979
    %v1076 = vmul.f32 %v980, %v980
    %v1077 = vmul.f32 %v981, %v981
    %v1078 = vmul.f32 %v982, %v982
    %v1079 = vmul.f32 %v983, %v983
    %v1080 = vmul.f32 %v984, %v984
    %v1081 = vmul.f32 %v985, %v985
    %v1082 = vmul.f32 %v986, %v986
    %v1083 = vmul.f32 %v987, %v987
    %v1084 = vmul.f32 %v988, %v988
    %v1085 = vmul.f32 %v989, %v989
    %v1086 = vmul.f32 %v990, %v990
    %v1087 = vmul.f32 %v991, %v991
    %v1088 = vmul.f32 %v992, %v992
    %v1089 = vmul.f32 %v993, %v993
    %v1090 = vmul.f32 %v994, %v994
    %v1091 = vmul.f32 %v995, %v995
    %v1092 = vadd.f32 %v1060, %v1061
    %1093 = vadd.xlane.f32.xlu0 %v1092
    %v1094 = vpop.xlane.xlu0 %1093
    %v1095 = vadd.f32 %v1062, %v1063
    %1096 = vadd.xlane.f32.xlu0 %v1095
    %v1097 = vpop.xlane.xlu0 %1096
    %v1098 = vadd.f32 %v1064, %v1065
    %1099 = vadd.xlane.f32.xlu0 %v1098
    %v1100 = vpop.xlane.xlu0 %1099
    %v1101 = vadd.f32 %v1066, %v1067
    %1102 = vadd.xlane.f32.xlu0 %v1101
    %v1103 = vpop.xlane.xlu0 %1102
    %v1104 = vadd.f32 %v1068, %v1069
    %1105 = vadd.xlane.f32.xlu0 %v1104
    %v1106 = vpop.xlane.xlu0 %1105
    %v1107 = vadd.f32 %v1070, %v1071
    %1108 = vadd.xlane.f32.xlu0 %v1107
    %v1109 = vpop.xlane.xlu0 %1108
    %v1110 = vadd.f32 %v1072, %v1073
    %1111 = vadd.xlane.f32.xlu0 %v1110
    %v1112 = vpop.xlane.xlu0 %1111
    %v1113 = vadd.f32 %v1074, %v1075
    %1114 = vadd.xlane.f32.xlu0 %v1113
    %v1115 = vpop.xlane.xlu0 %1114
    %v1116 = vadd.f32 %v1076, %v1077
    %1117 = vadd.xlane.f32.xlu0 %v1116
    %v1118 = vpop.xlane.xlu0 %1117
    %v1119 = vadd.f32 %v1078, %v1079
    %1120 = vadd.xlane.f32.xlu0 %v1119
    %v1121 = vpop.xlane.xlu0 %1120
    %v1122 = vadd.f32 %v1080, %v1081
    %1123 = vadd.xlane.f32.xlu0 %v1122
    %v1124 = vpop.xlane.xlu0 %1123
    %v1125 = vadd.f32 %v1082, %v1083
    %1126 = vadd.xlane.f32.xlu0 %v1125
    %v1127 = vpop.xlane.xlu0 %1126
    %v1128 = vadd.f32 %v1084, %v1085
    %1129 = vadd.xlane.f32.xlu0 %v1128
    %v1130 = vpop.xlane.xlu0 %1129
    %v1131 = vadd.f32 %v1086, %v1087
    %1132 = vadd.xlane.f32.xlu0 %v1131
    %v1133 = vpop.xlane.xlu0 %1132
    %v1134 = vadd.f32 %v1088, %v1089
    %1135 = vadd.xlane.f32.xlu0 %v1134
    %v1136 = vpop.xlane.xlu0 %1135
    %v1137 = vadd.f32 %v1090, %v1091
    %1138 = vadd.xlane.f32.xlu0 %v1137
    %v1139 = vpop.xlane.xlu0 %1138
    %v1140 = vmul.f32 %v1094, %v374
    %v1141 = vmul.f32 %v1097, %v374
    %v1142 = vmul.f32 %v1100, %v374
    %v1143 = vmul.f32 %v1103, %v374
    %v1144 = vmul.f32 %v1106, %v374
    %v1145 = vmul.f32 %v1109, %v374
    %v1146 = vmul.f32 %v1112, %v374
    %v1147 = vmul.f32 %v1115, %v374
    %v1148 = vmul.f32 %v1118, %v374
    %v1149 = vmul.f32 %v1121, %v374
    %v1150 = vmul.f32 %v1124, %v374
    %v1151 = vmul.f32 %v1127, %v374
    %v1152 = vmul.f32 %v1130, %v374
    %v1153 = vmul.f32 %v1133, %v374
    %v1154 = vmul.f32 %v1136, %v374
    %v1155 = vmul.f32 %v1139, %v374
    %v1156 = vmul.f32 %v1044, %v1044
    %v1157 = vmul.f32 %v1045, %v1045
    %v1158 = vmul.f32 %v1046, %v1046
    %v1159 = vmul.f32 %v1047, %v1047
    %v1160 = vmul.f32 %v1048, %v1048
    %v1161 = vmul.f32 %v1049, %v1049
    %v1162 = vmul.f32 %v1050, %v1050
    %v1163 = vmul.f32 %v1051, %v1051
    %v1164 = vmul.f32 %v1052, %v1052
    %v1165 = vmul.f32 %v1053, %v1053
    %v1166 = vmul.f32 %v1054, %v1054
    %v1167 = vmul.f32 %v1055, %v1055
    %v1168 = vmul.f32 %v1056, %v1056
    %v1169 = vmul.f32 %v1057, %v1057
    %v1170 = vmul.f32 %v1058, %v1058
    %v1171 = vmul.f32 %v1059, %v1059
    %v1172 = vsub.f32 %v1140, %v1156
    %v1173 = vsub.f32 %v1141, %v1157
    %v1174 = vsub.f32 %v1142, %v1158
    %v1175 = vsub.f32 %v1143, %v1159
    %v1176 = vsub.f32 %v1144, %v1160
    %v1177 = vsub.f32 %v1145, %v1161
    %v1178 = vsub.f32 %v1146, %v1162
    %v1179 = vsub.f32 %v1147, %v1163
    %v1180 = vsub.f32 %v1148, %v1164
    %v1181 = vsub.f32 %v1149, %v1165
    %v1182 = vsub.f32 %v1150, %v1166
    %v1183 = vsub.f32 %v1151, %v1167
    %v1184 = vsub.f32 %v1152, %v1168
    %v1185 = vsub.f32 %v1153, %v1169
    %v1186 = vsub.f32 %v1154, %v1170
    %v1187 = vsub.f32 %v1155, %v1171
    %v1188 = vmax.f32 %v1172, 0.0
    %v1189 = vmax.f32 %v1173, 0.0
    %v1190 = vmax.f32 %v1174, 0.0
    %v1191 = vmax.f32 %v1175, 0.0
    %v1192 = vmax.f32 %v1176, 0.0
    %v1193 = vmax.f32 %v1177, 0.0
    %v1194 = vmax.f32 %v1178, 0.0
    %v1195 = vmax.f32 %v1179, 0.0
    %v1196 = vmax.f32 %v1180, 0.0
    %v1197 = vmax.f32 %v1181, 0.0
    %v1198 = vmax.f32 %v1182, 0.0
    %v1199 = vmax.f32 %v1183, 0.0
    %v1200 = vmax.f32 %v1184, 0.0
    %v1201 = vmax.f32 %v1185, 0.0
    %v1202 = vmax.f32 %v1186, 0.0
    %v1203 = vmax.f32 %v1187, 0.0
    %v1204 = vsub.f32 %v964, %v1044
    %v1205 = vsub.f32 %v965, %v1044
    %v1206 = vsub.f32 %v966, %v1045
    %v1207 = vsub.f32 %v967, %v1045
    %v1208 = vsub.f32 %v968, %v1046
    %v1209 = vsub.f32 %v969, %v1046
    %v1210 = vsub.f32 %v970, %v1047
    %v1211 = vsub.f32 %v971, %v1047
    %v1212 = vsub.f32 %v972, %v1048
    %v1213 = vsub.f32 %v973, %v1048
    %v1214 = vsub.f32 %v974, %v1049
    %v1215 = vsub.f32 %v975, %v1049
    %v1216 = vsub.f32 %v976, %v1050
    %v1217 = vsub.f32 %v977, %v1050
    %v1218 = vsub.f32 %v978, %v1051
    %v1219 = vsub.f32 %v979, %v1051
    %v1220 = vsub.f32 %v980, %v1052
    %v1221 = vsub.f32 %v981, %v1052
    %v1222 = vsub.f32 %v982, %v1053
    %v1223 = vsub.f32 %v983, %v1053
    %v1224 = vsub.f32 %v984, %v1054
    %v1225 = vsub.f32 %v985, %v1054
    %v1226 = vsub.f32 %v986, %v1055
    %v1227 = vsub.f32 %v987, %v1055
    %v1228 = vsub.f32 %v988, %v1056
    %v1229 = vsub.f32 %v989, %v1056
    %v1230 = vsub.f32 %v990, %v1057
    %v1231 = vsub.f32 %v991, %v1057
    %v1232 = vsub.f32 %v992, %v1058
    %v1233 = vsub.f32 %v993, %v1058
    %v1234 = vsub.f32 %v994, %v1059
    %v1235 = vsub.f32 %v995, %v1059
    %v1236 = vadd.f32 %v1188, 1e-05
    %v1237 = vadd.f32 %v1189, 1e-05
    %v1238 = vadd.f32 %v1190, 1e-05
    %v1239 = vadd.f32 %v1191, 1e-05
    %v1240 = vadd.f32 %v1192, 1e-05
    %v1241 = vadd.f32 %v1193, 1e-05
    %v1242 = vadd.f32 %v1194, 1e-05
    %v1243 = vadd.f32 %v1195, 1e-05
    %v1244 = vadd.f32 %v1196, 1e-05
    %v1245 = vadd.f32 %v1197, 1e-05
    %v1246 = vadd.f32 %v1198, 1e-05
    %v1247 = vadd.f32 %v1199, 1e-05
    %v1248 = vadd.f32 %v1200, 1e-05
    %v1249 = vadd.f32 %v1201, 1e-05
    %v1250 = vadd.f32 %v1202, 1e-05
    %v1251 = vadd.f32 %v1203, 1e-05
    %v1252 = vrsqrt.pop %v1236
    %v1253 = vrsqrt.pop %v1237
    %v1254 = vrsqrt.pop %v1238
    %v1255 = vrsqrt.pop %v1239
    %v1256 = vrsqrt.pop %v1240
    %v1257 = vrsqrt.pop %v1241
    %v1258 = vrsqrt.pop %v1242
    %v1259 = vrsqrt.pop %v1243
    %v1260 = vrsqrt.pop %v1244
    %v1261 = vrsqrt.pop %v1245
    %v1262 = vrsqrt.pop %v1246
    %v1263 = vrsqrt.pop %v1247
    %v1264 = vrsqrt.pop %v1248
    %v1265 = vrsqrt.pop %v1249
    %v1266 = vrsqrt.pop %v1250
    %v1267 = vrsqrt.pop %v1251
    %v1268 = vmul.f32 %v1204, %v1252
    %v1269 = vmul.f32 %v1205, %v1252
    %v1270 = vmul.f32 %v1206, %v1253
    %v1271 = vmul.f32 %v1207, %v1253
    %v1272 = vmul.f32 %v1208, %v1254
    %v1273 = vmul.f32 %v1209, %v1254
    %v1274 = vmul.f32 %v1210, %v1255
    %v1275 = vmul.f32 %v1211, %v1255
    %v1276 = vmul.f32 %v1212, %v1256
    %v1277 = vmul.f32 %v1213, %v1256
    %v1278 = vmul.f32 %v1214, %v1257
    %v1279 = vmul.f32 %v1215, %v1257
    %v1280 = vmul.f32 %v1216, %v1258
    %v1281 = vmul.f32 %v1217, %v1258
    %v1282 = vmul.f32 %v1218, %v1259
    %v1283 = vmul.f32 %v1219, %v1259
    %v1284 = vmul.f32 %v1220, %v1260
    %v1285 = vmul.f32 %v1221, %v1260
    %v1286 = vmul.f32 %v1222, %v1261
    %v1287 = vmul.f32 %v1223, %v1261
    %v1288 = vmul.f32 %v1224, %v1262
    %v1289 = vmul.f32 %v1225, %v1262
    %v1290 = vmul.f32 %v1226, %v1263
    %v1291 = vmul.f32 %v1227, %v1263
    %v1292 = vmul.f32 %v1228, %v1264
    %v1293 = vmul.f32 %v1229, %v1264
    %v1294 = vmul.f32 %v1230, %v1265
    %v1295 = vmul.f32 %v1231, %v1265
    %v1296 = vmul.f32 %v1232, %v1266
    %v1297 = vmul.f32 %v1233, %v1266
    %v1298 = vmul.f32 %v1234, %v1267
    %v1299 = vmul.f32 %v1235, %v1267
    %v1300 = vpack.c.bf16 %v1270, %v1268
    %v1301 = vpack.c.bf16 %v1271, %v1269
    %v1302 = vpack.c.bf16 %v1274, %v1272
    %v1303 = vpack.c.bf16 %v1275, %v1273
    %v1304 = vpack.c.bf16 %v1278, %v1276
    %v1305 = vpack.c.bf16 %v1279, %v1277
    %v1306 = vpack.c.bf16 %v1282, %v1280
    %v1307 = vpack.c.bf16 %v1283, %v1281
    %v1308 = vpack.c.bf16 %v1286, %v1284
    %v1309 = vpack.c.bf16 %v1287, %v1285
    %v1310 = vpack.c.bf16 %v1290, %v1288
    %v1311 = vpack.c.bf16 %v1291, %v1289
    %v1312 = vpack.c.bf16 %v1294, %v1292
    %v1313 = vpack.c.bf16 %v1295, %v1293
    %v1314 = vpack.c.bf16 %v1298, %v1296
    %v1315 = vpack.c.bf16 %v1299, %v1297
    %v1316 = vld [vmem:[#allocation6] sm:$0xf]
    %v1317 = vld [vmem:[#allocation6 + $0x4] sm:$0xf]
    %v1318 = vld [vmem:[#allocation6 + $0x8] sm:$0xf]
    %v1319 = vld [vmem:[#allocation6 + $0xc] sm:$0xf]
    %v1320 = vld [vmem:[#allocation6 + $0x10] sm:$0xf]
    %v1321 = vld [vmem:[#allocation6 + $0x14] sm:$0xf]
    %v1322 = vld [vmem:[#allocation6 + $0x18] sm:$0xf]
    %v1323 = vld [vmem:[#allocation6 + $0x1c] sm:$0xf]
    %v1324 = vld [vmem:[#allocation6 + $0x20] sm:$0xf]
    %v1325 = vld [vmem:[#allocation6 + $0x24] sm:$0xf]
    %v1326 = vld [vmem:[#allocation6 + $0x28] sm:$0xf]
    %v1327 = vld [vmem:[#allocation6 + $0x2c] sm:$0xf]
    %v1328 = vld [vmem:[#allocation6 + $0x30] sm:$0xf]
    %v1329 = vld [vmem:[#allocation6 + $0x34] sm:$0xf]
    %v1330 = vld [vmem:[#allocation6 + $0x38] sm:$0xf]
    %v1331 = vld [vmem:[#allocation6 + $0x3c] sm:$0xf]
    %v1332 = vld [vmem:[#allocation6 + $0x40] sm:$0xf]
    %v1333 = vld [vmem:[#allocation6 + $0x44] sm:$0xf]
    %v1334 = vld [vmem:[#allocation6 + $0x48] sm:$0xf]
    %v1335 = vld [vmem:[#allocation6 + $0x4c] sm:$0xf]
    %v1336 = vld [vmem:[#allocation6 + $0x50] sm:$0xf]
    %v1337 = vld [vmem:[#allocation6 + $0x54] sm:$0xf]
    %v1338 = vld [vmem:[#allocation6 + $0x58] sm:$0xf]
    %v1339 = vld [vmem:[#allocation6 + $0x5c] sm:$0xf]
    %v1340 = vld [vmem:[#allocation6 + $0x60] sm:$0xf]
    %v1341 = vld [vmem:[#allocation6 + $0x64] sm:$0xf]
    %v1342 = vld [vmem:[#allocation6 + $0x68] sm:$0xf]
    %v1343 = vld [vmem:[#allocation6 + $0x6c] sm:$0xf]
    %v1344 = vld [vmem:[#allocation6 + $0x70] sm:$0xf]
    %v1345 = vld [vmem:[#allocation6 + $0x74] sm:$0xf]
    %v1346 = vld [vmem:[#allocation6 + $0x78] sm:$0xf]
    %v1347 = vld [vmem:[#allocation6 + $0x7c] sm:$0xf]
    %v1348 = vld [vmem:[%s6] sm:$0x1]
    %v1350 = vlaneseq
    %v1351 = vshrl.u32 %v1350, 7
    %v1352 = vsub.s32 0, %v1351
    %v1353 = vrot.slane %v1348, %v1352
    %v1387 = vunpack.c.l.b16 %v1316
    %v1388 = vunpack.c.l.b16 %v1317
    %v1389 = vunpack.c.l.b16 %v1318
    %v1390 = vunpack.c.l.b16 %v1319
    %v1391 = vunpack.c.l.b16 %v1320
    %v1392 = vunpack.c.l.b16 %v1321
    %v1393 = vunpack.c.l.b16 %v1322
    %v1394 = vunpack.c.l.b16 %v1323
    %v1395 = vunpack.c.l.b16 %v1324
    %v1396 = vunpack.c.l.b16 %v1325
    %v1397 = vunpack.c.l.b16 %v1326
    %v1398 = vunpack.c.l.b16 %v1327
    %v1399 = vunpack.c.l.b16 %v1328
    %v1400 = vunpack.c.l.b16 %v1329
    %v1401 = vunpack.c.l.b16 %v1330
    %v1402 = vunpack.c.l.b16 %v1331
    %v1403 = vunpack.c.l.b16 %v1332
    %v1404 = vunpack.c.l.b16 %v1333
    %v1405 = vunpack.c.l.b16 %v1334
    %v1406 = vunpack.c.l.b16 %v1335
    %v1407 = vunpack.c.l.b16 %v1336
    %v1408 = vunpack.c.l.b16 %v1337
    %v1409 = vunpack.c.l.b16 %v1338
    %v1410 = vunpack.c.l.b16 %v1339
    %v1411 = vunpack.c.l.b16 %v1340
    %v1412 = vunpack.c.l.b16 %v1341
    %v1413 = vunpack.c.l.b16 %v1342
    %v1414 = vunpack.c.l.b16 %v1343
    %v1415 = vunpack.c.l.b16 %v1344
    %v1416 = vunpack.c.l.b16 %v1345
    %v1417 = vunpack.c.l.b16 %v1346
    %v1418 = vunpack.c.l.b16 %v1347
    %v1419 = vpack.c.b16 %v1388, %v1387
    %v1420 = vpack.c.b16 %v1390, %v1389
    %v1421 = vpack.c.b16 %v1392, %v1391
    %v1422 = vpack.c.b16 %v1394, %v1393
    %v1423 = vpack.c.b16 %v1396, %v1395
    %v1424 = vpack.c.b16 %v1398, %v1397
    %v1425 = vpack.c.b16 %v1400, %v1399
    %v1426 = vpack.c.b16 %v1402, %v1401
    %v1427 = vpack.c.b16 %v1404, %v1403
    %v1428 = vpack.c.b16 %v1406, %v1405
    %v1429 = vpack.c.b16 %v1408, %v1407
    %v1430 = vpack.c.b16 %v1410, %v1409
    %v1431 = vpack.c.b16 %v1412, %v1411
    %v1432 = vpack.c.b16 %v1414, %v1413
    %v1433 = vpack.c.b16 %v1416, %v1415
    %v1434 = vpack.c.b16 %v1418, %v1417
    %1451 = vmatprep.subr.bf16.mxu0 0
    %1452 = vmatpush1.bf16.msra.mxu0 %v1426
    %1453 = vmatprep.subr.bf16.mxu0 0
    %1454 = vmatpush1.bf16.msra.mxu0 %v1425
    %1455 = vmatprep.subr.bf16.mxu0 0
    %1456 = vmatpush1.bf16.msra.mxu0 %v1424
    %1457 = vmatprep.subr.bf16.mxu0 0
    %1458 = vmatpush1.bf16.msra.mxu0 %v1423
    %1459 = vmatprep.subr.bf16.mxu0 0
    %1460 = vmatpush1.bf16.msra.mxu0 %v1422
    %1461 = vmatprep.subr.bf16.mxu0 0
    %1462 = vmatpush1.bf16.msra.mxu0 %v1421
    %1463 = vmatprep.subr.bf16.mxu0 0
    %1464 = vmatpush1.bf16.msra.mxu0 %v1420
    %1465 = vmatprep.subr.bf16.mxu0 0
    %1466 = vmatpush1.bf16.msra.mxu0 %v1419
    %1467 = vmatprep.subr.bf16.mxu0 0
    %1468 = vmatpush2.bf16.msra.mxu0 %v1434
    %1469 = vmatprep.subr.bf16.mxu0 0
    %1470 = vmatpush2.bf16.msra.mxu0 %v1433
    %1471 = vmatprep.subr.bf16.mxu0 0
    %1472 = vmatpush2.bf16.msra.mxu0 %v1432
    %1473 = vmatprep.subr.bf16.mxu0 0
    %1474 = vmatpush2.bf16.msra.mxu0 %v1431
    %1475 = vmatprep.subr.bf16.mxu0 0
    %1476 = vmatpush2.bf16.msra.mxu0 %v1430
    %1477 = vmatprep.subr.bf16.mxu0 0
    %1478 = vmatpush2.bf16.msra.mxu0 %v1429
    %1479 = vmatprep.subr.bf16.mxu0 0
    %1480 = vmatpush2.bf16.msra.mxu0 %v1428
    %1481 = vmatprep.subr.bf16.mxu0 0
    %1482 = vmatpush2.bf16.msra.mxu0 %v1427
    %1483 = vmatprep.mubr.bf16.mxu0 %v1301
    %1484 = vmatmul.mubr.bf16.gmra.mxu0 %v1300
    %v1485 = vpop.f32.mrf.mxu0
    %v1486 = vadd.f32 %v1353, %v1485
    %v1487 = vpop.f32.mrf.mxu0
    %v1488 = vpop.f32.mrf.mxu0
    %v1489 = vadd.f32 %v1353, %v1488
    %v1490 = vpop.f32.mrf.mxu0
    %1491 = vmatprep.mubr.bf16.mxu0 %v1303
    %1492 = vmatmul.mubr.bf16.gmra.mxu0 %v1302
    %v1493 = vpop.f32.mrf.mxu0
    %v1494 = vadd.f32 %v1353, %v1493
    %v1495 = vpop.f32.mrf.mxu0
    %v1496 = vpop.f32.mrf.mxu0
    %v1497 = vadd.f32 %v1353, %v1496
    %v1498 = vpop.f32.mrf.mxu0
    %1499 = vmatprep.mubr.bf16.mxu0 %v1305
    %1500 = vmatmul.mubr.bf16.gmra.mxu0 %v1304
    %v1501 = vpop.f32.mrf.mxu0
    %v1502 = vadd.f32 %v1353, %v1501
    %v1503 = vpop.f32.mrf.mxu0
    %v1504 = vpop.f32.mrf.mxu0
    %v1505 = vadd.f32 %v1353, %v1504
    %v1506 = vpop.f32.mrf.mxu0
    %1507 = vmatprep.mubr.bf16.mxu0 %v1307
    %1508 = vmatmul.mubr.bf16.gmra.mxu0 %v1306
    %v1509 = vpop.f32.mrf.mxu0
    %v1510 = vadd.f32 %v1353, %v1509
    %v1511 = vpop.f32.mrf.mxu0
    %v1512 = vpop.f32.mrf.mxu0
    %v1513 = vadd.f32 %v1353, %v1512
    %v1514 = vpop.f32.mrf.mxu0
    %1515 = vmatprep.mubr.bf16.mxu0 %v1309
    %1516 = vmatmul.mubr.bf16.gmra.mxu0 %v1308
    %v1517 = vpop.f32.mrf.mxu0
    %v1518 = vadd.f32 %v1353, %v1517
    %v1519 = vpop.f32.mrf.mxu0
    %v1520 = vpop.f32.mrf.mxu0
    %v1521 = vadd.f32 %v1353, %v1520
    %v1522 = vpop.f32.mrf.mxu0
    %1523 = vmatprep.mubr.bf16.mxu0 %v1311
    %1524 = vmatmul.mubr.bf16.gmra.mxu0 %v1310
    %v1525 = vpop.f32.mrf.mxu0
    %v1526 = vadd.f32 %v1353, %v1525
    %v1527 = vpop.f32.mrf.mxu0
    %v1528 = vpop.f32.mrf.mxu0
    %v1529 = vadd.f32 %v1353, %v1528
    %v1530 = vpop.f32.mrf.mxu0
    %1531 = vmatprep.mubr.bf16.mxu0 %v1313
    %1532 = vmatmul.mubr.bf16.gmra.mxu0 %v1312
    %v1533 = vpop.f32.mrf.mxu0
    %v1534 = vadd.f32 %v1353, %v1533
    %v1535 = vpop.f32.mrf.mxu0
    %v1536 = vpop.f32.mrf.mxu0
    %v1537 = vadd.f32 %v1353, %v1536
    %v1538 = vpop.f32.mrf.mxu0
    %1539 = vmatprep.mubr.bf16.mxu0 %v1315
    %1540 = vmatmul.mubr.bf16.gmra.mxu0 %v1314
    %v1541 = vpop.f32.mrf.mxu0
    %v1542 = vadd.f32 %v1353, %v1541
    %v1543 = vpop.f32.mrf.mxu0
    %v1544 = vpop.f32.mrf.mxu0
    %v1545 = vadd.f32 %v1353, %v1544
    %v1546 = vpop.f32.mrf.mxu0
    %1547 = vdwg.mxu0
    %v1548 = vmax.f32 %v1486, 0.0
    %v1549 = vmax.f32 %v1489, 0.0
    %v1550 = vmax.f32 %v1494, 0.0
    %v1551 = vmax.f32 %v1497, 0.0
    %v1552 = vmax.f32 %v1502, 0.0
    %v1553 = vmax.f32 %v1505, 0.0
    %v1554 = vmax.f32 %v1510, 0.0
    %v1555 = vmax.f32 %v1513, 0.0
    %v1556 = vmax.f32 %v1518, 0.0
    %v1557 = vmax.f32 %v1521, 0.0
    %v1558 = vmax.f32 %v1526, 0.0
    %v1559 = vmax.f32 %v1529, 0.0
    %v1560 = vmax.f32 %v1534, 0.0
    %v1561 = vmax.f32 %v1537, 0.0
    %v1562 = vmax.f32 %v1542, 0.0
    %v1563 = vmax.f32 %v1545, 0.0
    %1564 = vadd.xlane.f32.xlu0 %v1548
    %v1565 = vpop.xlane.xlu0 %1564
    %1566 = vadd.xlane.f32.xlu0 %v1549
    %v1567 = vpop.xlane.xlu0 %1566
    %1568 = vadd.xlane.f32.xlu0 %v1550
    %v1569 = vpop.xlane.xlu0 %1568
    %1570 = vadd.xlane.f32.xlu0 %v1551
    %v1571 = vpop.xlane.xlu0 %1570
    %1572 = vadd.xlane.f32.xlu0 %v1552
    %v1573 = vpop.xlane.xlu0 %1572
    %1574 = vadd.xlane.f32.xlu0 %v1553
    %v1575 = vpop.xlane.xlu0 %1574
    %1576 = vadd.xlane.f32.xlu0 %v1554
    %v1577 = vpop.xlane.xlu0 %1576
    %1578 = vadd.xlane.f32.xlu0 %v1555
    %v1579 = vpop.xlane.xlu0 %1578
    %1580 = vadd.xlane.f32.xlu0 %v1556
    %v1581 = vpop.xlane.xlu0 %1580
    %1582 = vadd.xlane.f32.xlu0 %v1557
    %v1583 = vpop.xlane.xlu0 %1582
    %1584 = vadd.xlane.f32.xlu0 %v1558
    %v1585 = vpop.xlane.xlu0 %1584
    %1586 = vadd.xlane.f32.xlu0 %v1559
    %v1587 = vpop.xlane.xlu0 %1586
    %1588 = vadd.xlane.f32.xlu0 %v1560
    %v1589 = vpop.xlane.xlu0 %1588
    %1590 = vadd.xlane.f32.xlu0 %v1561
    %v1591 = vpop.xlane.xlu0 %1590
    %1592 = vadd.xlane.f32.xlu0 %v1562
    %v1593 = vpop.xlane.xlu0 %1592
    %1594 = vadd.xlane.f32.xlu0 %v1563
    %v1595 = vpop.xlane.xlu0 %1594
    %v1596 = vrcp.pop 128.0
    %v1597 = vmul.f32 %v1565, %v1596
    %v1598 = vmul.f32 %v1567, %v1596
    %v1599 = vmul.f32 %v1569, %v1596
    %v1600 = vmul.f32 %v1571, %v1596
    %v1601 = vmul.f32 %v1573, %v1596
    %v1602 = vmul.f32 %v1575, %v1596
    %v1603 = vmul.f32 %v1577, %v1596
    %v1604 = vmul.f32 %v1579, %v1596
    %v1605 = vmul.f32 %v1581, %v1596
    %v1606 = vmul.f32 %v1583, %v1596
    %v1607 = vmul.f32 %v1585, %v1596
    %v1608 = vmul.f32 %v1587, %v1596
    %v1609 = vmul.f32 %v1589, %v1596
    %v1610 = vmul.f32 %v1591, %v1596
    %v1611 = vmul.f32 %v1593, %v1596
    %v1612 = vmul.f32 %v1595, %v1596
    %v1613 = vmul.f32 %v1548, %v1548
    %v1614 = vmul.f32 %v1549, %v1549
    %v1615 = vmul.f32 %v1550, %v1550
    %v1616 = vmul.f32 %v1551, %v1551
    %v1617 = vmul.f32 %v1552, %v1552
    %v1618 = vmul.f32 %v1553, %v1553
    %v1619 = vmul.f32 %v1554, %v1554
    %v1620 = vmul.f32 %v1555, %v1555
    %v1621 = vmul.f32 %v1556, %v1556
    %v1622 = vmul.f32 %v1557, %v1557
    %v1623 = vmul.f32 %v1558, %v1558
    %v1624 = vmul.f32 %v1559, %v1559
    %v1625 = vmul.f32 %v1560, %v1560
    %v1626 = vmul.f32 %v1561, %v1561
    %v1627 = vmul.f32 %v1562, %v1562
    %v1628 = vmul.f32 %v1563, %v1563
    %1629 = vadd.xlane.f32.xlu0 %v1613
    %v1630 = vpop.xlane.xlu0 %1629
    %1631 = vadd.xlane.f32.xlu0 %v1614
    %v1632 = vpop.xlane.xlu0 %1631
    %1633 = vadd.xlane.f32.xlu0 %v1615
    %v1634 = vpop.xlane.xlu0 %1633
    %1635 = vadd.xlane.f32.xlu0 %v1616
    %v1636 = vpop.xlane.xlu0 %1635
    %1637 = vadd.xlane.f32.xlu0 %v1617
    %v1638 = vpop.xlane.xlu0 %1637
    %1639 = vadd.xlane.f32.xlu0 %v1618
    %v1640 = vpop.xlane.xlu0 %1639
    %1641 = vadd.xlane.f32.xlu0 %v1619
    %v1642 = vpop.xlane.xlu0 %1641
    %1643 = vadd.xlane.f32.xlu0 %v1620
    %v1644 = vpop.xlane.xlu0 %1643
    %1645 = vadd.xlane.f32.xlu0 %v1621
    %v1646 = vpop.xlane.xlu0 %1645
    %1647 = vadd.xlane.f32.xlu0 %v1622
    %v1648 = vpop.xlane.xlu0 %1647
    %1649 = vadd.xlane.f32.xlu0 %v1623
    %v1650 = vpop.xlane.xlu0 %1649
    %1651 = vadd.xlane.f32.xlu0 %v1624
    %v1652 = vpop.xlane.xlu0 %1651
    %1653 = vadd.xlane.f32.xlu0 %v1625
    %v1654 = vpop.xlane.xlu0 %1653
    %1655 = vadd.xlane.f32.xlu0 %v1626
    %v1656 = vpop.xlane.xlu0 %1655
    %1657 = vadd.xlane.f32.xlu0 %v1627
    %v1658 = vpop.xlane.xlu0 %1657
    %1659 = vadd.xlane.f32.xlu0 %v1628
    %v1660 = vpop.xlane.xlu0 %1659
    %v1661 = vmul.f32 %v1630, %v1596
    %v1662 = vmul.f32 %v1632, %v1596
    %v1663 = vmul.f32 %v1634, %v1596
    %v1664 = vmul.f32 %v1636, %v1596
    %v1665 = vmul.f32 %v1638, %v1596
    %v1666 = vmul.f32 %v1640, %v1596
    %v1667 = vmul.f32 %v1642, %v1596
    %v1668 = vmul.f32 %v1644, %v1596
    %v1669 = vmul.f32 %v1646, %v1596
    %v1670 = vmul.f32 %v1648, %v1596
    %v1671 = vmul.f32 %v1650, %v1596
    %v1672 = vmul.f32 %v1652, %v1596
    %v1673 = vmul.f32 %v1654, %v1596
    %v1674 = vmul.f32 %v1656, %v1596
    %v1675 = vmul.f32 %v1658, %v1596
    %v1676 = vmul.f32 %v1660, %v1596
    %v1677 = vmul.f32 %v1597, %v1597
    %v1678 = vmul.f32 %v1598, %v1598
    %v1679 = vmul.f32 %v1599, %v1599
    %v1680 = vmul.f32 %v1600, %v1600
    %v1681 = vmul.f32 %v1601, %v1601
    %v1682 = vmul.f32 %v1602, %v1602
    %v1683 = vmul.f32 %v1603, %v1603
    %v1684 = vmul.f32 %v1604, %v1604
    %v1685 = vmul.f32 %v1605, %v1605
    %v1686 = vmul.f32 %v1606, %v1606
    %v1687 = vmul.f32 %v1607, %v1607
    %v1688 = vmul.f32 %v1608, %v1608
    %v1689 = vmul.f32 %v1609, %v1609
    %v1690 = vmul.f32 %v1610, %v1610
    %v1691 = vmul.f32 %v1611, %v1611
    %v1692 = vmul.f32 %v1612, %v1612
    %v1693 = vsub.f32 %v1661, %v1677
    %v1694 = vsub.f32 %v1662, %v1678
    %v1695 = vsub.f32 %v1663, %v1679
    %v1696 = vsub.f32 %v1664, %v1680
    %v1697 = vsub.f32 %v1665, %v1681
    %v1698 = vsub.f32 %v1666, %v1682
    %v1699 = vsub.f32 %v1667, %v1683
    %v1700 = vsub.f32 %v1668, %v1684
    %v1701 = vsub.f32 %v1669, %v1685
    %v1702 = vsub.f32 %v1670, %v1686
    %v1703 = vsub.f32 %v1671, %v1687
    %v1704 = vsub.f32 %v1672, %v1688
    %v1705 = vsub.f32 %v1673, %v1689
    %v1706 = vsub.f32 %v1674, %v1690
    %v1707 = vsub.f32 %v1675, %v1691
    %v1708 = vsub.f32 %v1676, %v1692
    %v1709 = vmax.f32 %v1693, 0.0
    %v1710 = vmax.f32 %v1694, 0.0
    %v1711 = vmax.f32 %v1695, 0.0
    %v1712 = vmax.f32 %v1696, 0.0
    %v1713 = vmax.f32 %v1697, 0.0
    %v1714 = vmax.f32 %v1698, 0.0
    %v1715 = vmax.f32 %v1699, 0.0
    %v1716 = vmax.f32 %v1700, 0.0
    %v1717 = vmax.f32 %v1701, 0.0
    %v1718 = vmax.f32 %v1702, 0.0
    %v1719 = vmax.f32 %v1703, 0.0
    %v1720 = vmax.f32 %v1704, 0.0
    %v1721 = vmax.f32 %v1705, 0.0
    %v1722 = vmax.f32 %v1706, 0.0
    %v1723 = vmax.f32 %v1707, 0.0
    %v1724 = vmax.f32 %v1708, 0.0
    %v1725 = vsub.f32 %v1548, %v1597
    %v1726 = vsub.f32 %v1549, %v1598
    %v1727 = vsub.f32 %v1550, %v1599
    %v1728 = vsub.f32 %v1551, %v1600
    %v1729 = vsub.f32 %v1552, %v1601
    %v1730 = vsub.f32 %v1553, %v1602
    %v1731 = vsub.f32 %v1554, %v1603
    %v1732 = vsub.f32 %v1555, %v1604
    %v1733 = vsub.f32 %v1556, %v1605
    %v1734 = vsub.f32 %v1557, %v1606
    %v1735 = vsub.f32 %v1558, %v1607
    %v1736 = vsub.f32 %v1559, %v1608
    %v1737 = vsub.f32 %v1560, %v1609
    %v1738 = vsub.f32 %v1561, %v1610
    %v1739 = vsub.f32 %v1562, %v1611
    %v1740 = vsub.f32 %v1563, %v1612
    %v1741 = vadd.f32 %v1709, 1e-05
    %v1742 = vadd.f32 %v1710, 1e-05
    %v1743 = vadd.f32 %v1711, 1e-05
    %v1744 = vadd.f32 %v1712, 1e-05
    %v1745 = vadd.f32 %v1713, 1e-05
    %v1746 = vadd.f32 %v1714, 1e-05
    %v1747 = vadd.f32 %v1715, 1e-05
    %v1748 = vadd.f32 %v1716, 1e-05
    %v1749 = vadd.f32 %v1717, 1e-05
    %v1750 = vadd.f32 %v1718, 1e-05
    %v1751 = vadd.f32 %v1719, 1e-05
    %v1752 = vadd.f32 %v1720, 1e-05
    %v1753 = vadd.f32 %v1721, 1e-05
    %v1754 = vadd.f32 %v1722, 1e-05
    %v1755 = vadd.f32 %v1723, 1e-05
    %v1756 = vadd.f32 %v1724, 1e-05
    %v1757 = vrsqrt.pop %v1741
    %v1758 = vrsqrt.pop %v1742
    %v1759 = vrsqrt.pop %v1743
    %v1760 = vrsqrt.pop %v1744
    %v1761 = vrsqrt.pop %v1745
    %v1762 = vrsqrt.pop %v1746
    %v1763 = vrsqrt.pop %v1747
    %v1764 = vrsqrt.pop %v1748
    %v1765 = vrsqrt.pop %v1749
    %v1766 = vrsqrt.pop %v1750
    %v1767 = vrsqrt.pop %v1751
    %v1768 = vrsqrt.pop %v1752
    %v1769 = vrsqrt.pop %v1753
    %v1770 = vrsqrt.pop %v1754
    %v1771 = vrsqrt.pop %v1755
    %v1772 = vrsqrt.pop %v1756
    %v1773 = vmul.f32 %v1725, %v1757
    %v1774 = vmul.f32 %v1726, %v1758
    %v1775 = vmul.f32 %v1727, %v1759
    %v1776 = vmul.f32 %v1728, %v1760
    %v1777 = vmul.f32 %v1729, %v1761
    %v1778 = vmul.f32 %v1730, %v1762
    %v1779 = vmul.f32 %v1731, %v1763
    %v1780 = vmul.f32 %v1732, %v1764
    %v1781 = vmul.f32 %v1733, %v1765
    %v1782 = vmul.f32 %v1734, %v1766
    %v1783 = vmul.f32 %v1735, %v1767
    %v1784 = vmul.f32 %v1736, %v1768
    %v1785 = vmul.f32 %v1737, %v1769
    %v1786 = vmul.f32 %v1738, %v1770
    %v1787 = vmul.f32 %v1739, %v1771
    %v1788 = vmul.f32 %v1740, %v1772
    %v1789 = vpack.c.bf16 %v1774, %v1773
    %v1790 = vpack.c.bf16 %v1776, %v1775
    %v1791 = vpack.c.bf16 %v1778, %v1777
    %v1792 = vpack.c.bf16 %v1780, %v1779
    %v1793 = vpack.c.bf16 %v1782, %v1781
    %v1794 = vpack.c.bf16 %v1784, %v1783
    %v1795 = vpack.c.bf16 %v1786, %v1785
    %v1796 = vpack.c.bf16 %v1788, %v1787
    %v1797 = vld [vmem:[%s7] sm:$0xf]
    %1798 = vmatprep.subr.bf16.mxu0 0
    %1799 = vmatpush1.bf16.xpose.msra.mxu0 %v1796
    %1800 = vmatprep.subr.bf16.mxu0 0
    %1801 = vmatpush1.bf16.xpose.msra.mxu0 %v1795
    %1802 = vmatprep.subr.bf16.mxu0 0
    %1803 = vmatpush1.bf16.xpose.msra.mxu0 %v1794
    %1804 = vmatprep.subr.bf16.mxu0 0
    %1805 = vmatpush1.bf16.xpose.msra.mxu0 %v1793
    %1806 = vmatprep.subr.bf16.mxu0 0
    %1807 = vmatpush1.bf16.xpose.msra.mxu0 %v1792
    %1808 = vmatprep.subr.bf16.mxu0 0
    %1809 = vmatpush1.bf16.xpose.msra.mxu0 %v1791
    %1810 = vmatprep.subr.bf16.mxu0 0
    %1811 = vmatpush1.bf16.xpose.msra.mxu0 %v1790
    %1812 = vmatprep.subr.bf16.mxu0 0
    %1813 = vmatpush1.bf16.xpose.msra.mxu0 %v1789
    %1814 = vmatprep.subr.bf16.mxu0 0
    %1815 = vmatpush2.bf16.xpose.msra.mxu0 0
    %1816 = vmatprep.subr.bf16.mxu0 0
    %1817 = vmatpush2.bf16.xpose.msra.mxu0 0
    %1818 = vmatprep.subr.bf16.mxu0 0
    %1819 = vmatpush2.bf16.xpose.msra.mxu0 0
    %1820 = vmatprep.subr.bf16.mxu0 0
    %1821 = vmatpush2.bf16.xpose.msra.mxu0 0
    %1822 = vmatprep.subr.bf16.mxu0 0
    %1823 = vmatpush2.bf16.xpose.msra.mxu0 0
    %1824 = vmatprep.subr.bf16.mxu0 0
    %1825 = vmatpush2.bf16.xpose.msra.mxu0 0
    %1826 = vmatprep.subr.bf16.mxu0 0
    %1827 = vmatpush2.bf16.xpose.msra.mxu0 0
    %1828 = vmatprep.subr.bf16.mxu0 0
    %1829 = vmatpush2.bf16.xpose.msra.mxu0 0
    %1830 = vmatprep.mubr.bf16.mxu0 0
    %1831 = vmatmul.mubr.bf16.gmra.mxu0 %v1797
    %v1832 = vpop.f32.mrf.mxu0
    %v1833 = vadd.f32 0.0, %v1832
    %v1834 = vpop.f32.mrf.mxu0
    %v1835 = vpop.f32.mrf.mxu0
    %v1836 = vpop.f32.mrf.mxu0
    %1837 = vdwg.mxu0
    %v1838 = vld [vmem:[#allocation2] sm:$0x1]
    %1840 = vset.pattern.permute.xlu0 0
    %1841 = vperm.xlu0 %1840, %v1838
    %v1842 = vpop.permute.xlu0 %1841
    %v1844 = vlaneseq
    %v1845 = vshrl.u32 %v1844, 7
    %v1846 = vsub.s32 0, %v1845
    %v1847 = vrot.slane %v1842, %v1846
    %v1848 = vadd.f32 %v1833, %v1847
    %1849 = vst [vmem:[#allocation8] sm:$0x1] %v1848
    // Predicated region
    $region46: #{tpu_custom_call.1} parent=1 // pred_check
      _
    $region47: #{tpu_custom_call.1} parent=1 // pred_check_branch
      %1851 = sbr.rel (0) target = $region49
    $region48: #{tpu_custom_call.1} parent=1 // pred_region
      %s1853 = ssub.s32 16, 16
      %1854 = vsyncadd [#allocation5], %s1853
      %s1856 = sshll.u32 [#allocation8], 4
      %s1857 = int_to_ptr.vmem [resolvable:$true] %s1856
      %1859 = dma.vmem_to_hbm [thread:$0]  %s1857, 16, %s9, [#allocation5]
    $region49: #{tpu_custom_call.1} parent=1 // pred_fallthru
      _
    // Predicated region
    $region50: #{tpu_custom_call.1} parent=1 // pred_check
      _
    $region51: #{tpu_custom_call.1} parent=1 // pred_check_branch
      %1861 = sbr.rel (0) target = $region53
    $region52: #{tpu_custom_call.1} parent=1 // pred_region
      %1862 = dma.done [#allocation5], 16
    $region53: #{tpu_custom_call.1} parent=1 // pred_fallthru
      _
    %1863 = vsyncpa [#allocation4], 1
    %1864 = vsyncpa [#allocation7], 1
    %1865 = vsyncpa [#allocation5], 1

</llo_original>
